<compile_context>
chip_gen: v7x
topology: tpu7x:2x2x1
jax: 0.10.0
libtpu: 0.0.40
codegen_flags: <defaults>
</compile_context>

<pallas_src>
import jax
import jax.numpy as jnp
from jax.experimental import pallas as pl
from jax.experimental.pallas import tpu as pltpu


# ----------------------------- Pallas kernel -------------------------------
def make_gru_ts_kernel(num_layers, num_fc, H, T, B):
    def kernel(*refs):
        idx = 0
        x_ref = refs[idx]; idx += 1                       # (T, B)
        # layer 0 params (input projection hoisted, recurrent part fused bias)
        w0_row   = refs[idx][...]; idx += 1               # (1, 3H)  input weight row
        b0_hoist = refs[idx][...]; idx += 1               # (1, 3H)  [bih_rz+bhh_rz | bih_n]
        whh0     = refs[idx][...]; idx += 1               # (H, 3H)
        b0_step  = refs[idx][...]; idx += 1               # (1, 3H)  [0 | 0 | bhh_n]
        # layers >= 1: fused weights/biases
        wcat = []
        for _ in range(num_layers - 1):
            wcat.append((refs[idx][...], refs[idx + 1][...]))   # (2H,4H), (1,4H)
            idx += 2
        fc_w = []
        for _ in range(num_fc):
            fc_w.append((refs[idx][...], refs[idx + 1][...]))   # (din,dout), (1,dout)
            idx += 2
        out_ref = refs[idx]

        # ---- hoisted layer-0 input projection (no recurrence dependence) ----
        # x: (T, B); w0_row: (1, 3H)  ->  gi0_all: (T, B, 3H)   (VPU broadcast mul)
        x = x_ref[...]
        gi0_all = x[:, :, None] * w0_row[None, :, :] + b0_hoist[None, :, :]

        hs = [jnp.zeros((B, H), jnp.float32) for _ in range(num_layers)]

        # Fully unrolled static time loop (T small & static): static slicing,
        # maximal scheduler visibility across iterations.
        for t in range(T):
            # ------------- layer 0: one (B,H)@(H,3H) matmul per step -------------
            gi0 = gi0_all[t]                                              # (B, 3H)
            g0 = jnp.dot(hs[0], whh0, preferred_element_type=jnp.float32) + b0_step
            rz = jax.nn.sigmoid(gi0[:, :2 * H] + g0[:, :2 * H])           # fused r,z
            r, zg = rz[:, :H], rz[:, H:]
            n = jnp.tanh(gi0[:, 2 * H:] + r * g0[:, 2 * H:])
            hs[0] = (1.0 - zg) * n + zg * hs[0]
            inp = hs[0]

            # ------------- layers >= 1: single fused matmul per step -------------
            for l in range(1, num_layers):
                w, b = wcat[l - 1]
                cat = jnp.concatenate([inp, hs[l]], axis=1)               # (B, 2H)
                g = jnp.dot(cat, w, preferred_element_type=jnp.float32) + b  # (B,4H)
                rz = jax.nn.sigmoid(g[:, :2 * H])                         # fused r,z
                r, zg = rz[:, :H], rz[:, H:]
                n = jnp.tanh(g[:, 2 * H:3 * H] + r * g[:, 3 * H:])
                hs[l] = (1.0 - zg) * n + zg * hs[l]
                inp = hs[l]

        # GRU seq-output[:, -1] == last layer's hidden after the last step
        feat = hs[num_layers - 1]                                         # (B, H)
        for i, (w, b) in enumerate(fc_w):
            feat = jnp.dot(feat, w, preferred_element_type=jnp.float32) + b
            if i < num_fc - 1:
                feat = jnp.maximum(feat, 0.0)        # ReLU
            else:
                feat = jax.nn.sigmoid(feat)          # final Sigmoid
        out_ref[...] = feat.astype(out_ref.dtype)

    return kernel


# --------------------------- fused-weight prep --------------------------------
def prep_fused_params(gru_params, H):
    """gru_params: list of (wih (in,3H), whh (H,3H), bih (1,3H), bhh (1,3H)),
    PyTorch gate order r, z, n (weights already transposed for x @ W)."""
    wih0, whh0, bih0, bhh0 = gru_params[0]
    # layer 0: hoisted input projection + pre-summed biases
    b0_hoist = jnp.concatenate(
        [bih0[:, :2 * H] + bhh0[:, :2 * H], bih0[:, 2 * H:]], axis=1)     # (1, 3H)
    b0_step = jnp.concatenate(
        [jnp.zeros((1, 2 * H), jnp.float32), bhh0[:, 2 * H:]], axis=1)    # (1, 3H)
    layer0 = (wih0, b0_hoist, whh0, b0_step)

    fused = []
    for (wih, whh, bih, bhh) in gru_params[1:]:
        zH = jnp.zeros((H, H), jnp.float32)
        top = jnp.concatenate([wih[:, :2 * H], wih[:, 2 * H:], zH], axis=1)  # (H, 4H)
        bot = jnp.concatenate([whh[:, :2 * H], zH, whh[:, 2 * H:]], axis=1)  # (H, 4H)
        wcat = jnp.concatenate([top, bot], axis=0)                           # (2H, 4H)
        bcat = jnp.concatenate(
            [bih[:, :2 * H] + bhh[:, :2 * H], bih[:, 2 * H:], bhh[:, 2 * H:]],
            axis=1)                                                          # (1, 4H)
        fused.append((wcat, bcat))
    return layer0, fused


# ------------------------------- wrapper ------------------------------------
def gru_time_series_forward(x_bt1, gru_params, fc_params, hidden_size, out_seq_len):
    """x_bt1: (B, T, 1) float32, batch_first like the PyTorch module."""
    B, T, _ = x_bt1.shape
    H = hidden_size
    # time-major (T, B), trailing size-1 dim dropped
    x_tb = jnp.transpose(x_bt1[:, :, 0], (1, 0))

    layer0, fused = prep_fused_params(gru_params, H)
    inputs = [x_tb, *layer0]
    for w, b in fused:
        inputs.extend([w, b])
    for w, b in fc_params:
        inputs.extend([w, b])

    kernel = make_gru_ts_kernel(len(gru_params), len(fc_params), H, T, B)
    out = pl.pallas_call(
        kernel,
        out_shape=jax.ShapeDtypeStruct((B, out_seq_len), jnp.float32),
        in_specs=[pl.BlockSpec(memory_space=pltpu.MemorySpace.VMEM)] * len(inputs),
        out_specs=pl.BlockSpec(memory_space=pltpu.MemorySpace.VMEM),
    )(*inputs)
    return out[:, :, None]  # unsqueeze(-1) -> (B, out_seq_len, 1)


# --------------------------- parameter init ----------------------------------
def init_params(key, hidden_size, num_recurrent_layers, num_fc_layers, out_seq_len):
    H = hidden_size
    gru_params = []
    bound_g = 1.0 / jnp.sqrt(jnp.float32(H))
    for l in range(num_recurrent_layers):
        in_l = 1 if l == 0 else H
        key, k1, k2, k3, k4 = jax.random.split(key, 5)
        wih = jax.random.uniform(k1, (in_l, 3 * H), jnp.float32, -bound_g, bound_g)
        whh = jax.random.uniform(k2, (H, 3 * H), jnp.float32, -bound_g, bound_g)
        bih = jax.random.uniform(k3, (1, 3 * H), jnp.float32, -bound_g, bound_g)
        bhh = jax.random.uniform(k4, (1, 3 * H), jnp.float32, -bound_g, bound_g)
        gru_params.append((wih, whh, bih, bhh))

    fc_params = []
    dims = [H] * (num_fc_layers - 1) + [out_seq_len]
    fan_in = H
    for d_out in dims:
        key, k1, k2 = jax.random.split(key, 3)
        bound = 1.0 / jnp.sqrt(jnp.float32(fan_in))
        w = jax.random.uniform(k1, (fan_in, d_out), jnp.float32, -bound, bound)
        b = jax.random.uniform(k2, (1, d_out), jnp.float32, -bound, bound)
        fc_params.append((w, b))
        fan_in = d_out
    return gru_params, fc_params


# ---------------------------- pure-JAX reference -----------------------------
def reference_forward(x_bt1, gru_params, fc_params, H):
    B, T, _ = x_bt1.shape
    hs = [jnp.zeros((B, H), jnp.float32) for _ in gru_params]
    for t in range(T):
        inp = x_bt1[:, t, :]
        for l, (wih, whh, bih, bhh) in enumerate(gru_params):
            gi = inp @ wih + bih
            gh = hs[l] @ whh + bhh
            r = jax.nn.sigmoid(gi[:, 0:H] + gh[:, 0:H])
            z = jax.nn.sigmoid(gi[:, H:2 * H] + gh[:, H:2 * H])
            n = jnp.tanh(gi[:, 2 * H:3 * H] + r * gh[:, 2 * H:3 * H])
            hs[l] = (1.0 - z) * n + z * hs[l]
            inp = hs[l]
    feat = hs[-1]
    for i, (w, b) in enumerate(fc_params):
        feat = feat @ w + b
        feat = jnp.maximum(feat, 0.0) if i < len(fc_params) - 1 else jax.nn.sigmoid(feat)
    return feat[:, :, None]


# --------------------------------- main ---------------------------------------
if __name__ == "__main__":
    hidden_size = 32
    num_recurrent_layers = 2
    num_fc_layers = 2          # => Linear+ReLU, then Linear+Sigmoid
    out_seq_len = 4
    B, T = 2, 8

    key = jax.random.PRNGKey(0)
    key, kx = jax.random.split(key)
    x = jax.random.normal(kx, (B, T, 1), jnp.float32)

    gru_params, fc_params = init_params(
        key, hidden_size, num_recurrent_layers, num_fc_layers, out_seq_len
    )

    out = gru_time_series_forward(x, gru_params, fc_params, hidden_size, out_seq_len)
    out = jax.block_until_ready(out)

    ref = reference_forward(x, gru_params, fc_params, hidden_size)
    assert out.shape == (B, out_seq_len, 1), out.shape
    assert jnp.allclose(out, ref, atol=1e-5, rtol=1e-5), (
        float(jnp.max(jnp.abs(out - ref)))
    )

    print("KERNEL_OK")
</pallas_src>

<mosaic_0001>
module attributes {stable_mosaic.version = 11 : i64} {
  func.func @kernel(%arg0: memref<8x2xf32, #tpu.memory_space<vmem>>, %arg1: memref<1x96xf32, #tpu.memory_space<vmem>>, %arg2: memref<1x96xf32, #tpu.memory_space<vmem>>, %arg3: memref<32x96xf32, #tpu.memory_space<vmem>>, %arg4: memref<1x96xf32, #tpu.memory_space<vmem>>, %arg5: memref<64x128xf32, #tpu.memory_space<vmem>>, %arg6: memref<1x128xf32, #tpu.memory_space<vmem>>, %arg7: memref<32x32xf32, #tpu.memory_space<vmem>>, %arg8: memref<1x32xf32, #tpu.memory_space<vmem>>, %arg9: memref<32x4xf32, #tpu.memory_space<vmem>>, %arg10: memref<1x4xf32, #tpu.memory_space<vmem>>, %arg11: memref<2x4xf32, #tpu.memory_space<vmem>>) attributes {dimension_semantics = [], scalar_prefetch = 0 : i64, scratch_operands = 0 : i64, tpu.core_type = #tpu.core_type<tc>} {
    %c0 = arith.constant 0 : index
    %c0_0 = arith.constant 0 : index
    %0 = vector.load %arg1[%c0, %c0_0] : memref<1x96xf32, #tpu.memory_space<vmem>>, vector<1x96xf32>
    %c0_1 = arith.constant 0 : index
    %c0_2 = arith.constant 0 : index
    %1 = vector.load %arg2[%c0_1, %c0_2] : memref<1x96xf32, #tpu.memory_space<vmem>>, vector<1x96xf32>
    %c0_3 = arith.constant 0 : index
    %c0_4 = arith.constant 0 : index
    %2 = vector.load %arg3[%c0_3, %c0_4] : memref<32x96xf32, #tpu.memory_space<vmem>>, vector<32x96xf32>
    %c0_5 = arith.constant 0 : index
    %c0_6 = arith.constant 0 : index
    %3 = vector.load %arg4[%c0_5, %c0_6] : memref<1x96xf32, #tpu.memory_space<vmem>>, vector<1x96xf32>
    %c0_7 = arith.constant 0 : index
    %c0_8 = arith.constant 0 : index
    %4 = vector.load %arg5[%c0_7, %c0_8] : memref<64x128xf32, #tpu.memory_space<vmem>>, vector<64x128xf32>
    %c0_9 = arith.constant 0 : index
    %c0_10 = arith.constant 0 : index
    %5 = vector.load %arg6[%c0_9, %c0_10] : memref<1x128xf32, #tpu.memory_space<vmem>>, vector<1x128xf32>
    %c0_11 = arith.constant 0 : index
    %c0_12 = arith.constant 0 : index
    %6 = vector.load %arg7[%c0_11, %c0_12] : memref<32x32xf32, #tpu.memory_space<vmem>>, vector<32x32xf32>
    %c0_13 = arith.constant 0 : index
    %c0_14 = arith.constant 0 : index
    %7 = vector.load %arg8[%c0_13, %c0_14] : memref<1x32xf32, #tpu.memory_space<vmem>>, vector<1x32xf32>
    %c0_15 = arith.constant 0 : index
    %c0_16 = arith.constant 0 : index
    %8 = vector.load %arg9[%c0_15, %c0_16] : memref<32x4xf32, #tpu.memory_space<vmem>>, vector<32x4xf32>
    %c0_17 = arith.constant 0 : index
    %c0_18 = arith.constant 0 : index
    %9 = vector.load %arg10[%c0_17, %c0_18] : memref<1x4xf32, #tpu.memory_space<vmem>>, vector<1x4xf32>
    %c0_19 = arith.constant 0 : index
    %c0_20 = arith.constant 0 : index
    %10 = vector.load %arg0[%c0_19, %c0_20] : memref<8x2xf32, #tpu.memory_space<vmem>>, vector<8x2xf32>
    %11 = vector.shape_cast %10 : vector<8x2xf32> to vector<8x2x1xf32>
    %12 = vector.shape_cast %0 : vector<1x96xf32> to vector<1x1x96xf32>
    %13 = vector.broadcast %11 : vector<8x2x1xf32> to vector<8x2x96xf32>
    %14 = vector.broadcast %12 : vector<1x1x96xf32> to vector<8x2x96xf32>
    %15 = arith.mulf %13, %14 : vector<8x2x96xf32>
    %16 = vector.shape_cast %1 : vector<1x96xf32> to vector<1x1x96xf32>
    %17 = vector.broadcast %16 : vector<1x1x96xf32> to vector<8x2x96xf32>
    %18 = arith.addf %15, %17 : vector<8x2x96xf32>
    %cst = arith.constant 0.000000e+00 : f32
    %19 = vector.broadcast %cst : f32 to vector<2x32xf32>
    %cst_21 = arith.constant 0.000000e+00 : f32
    %20 = vector.broadcast %cst_21 : f32 to vector<2x32xf32>
    %21 = vector.extract_strided_slice %18 {offsets = [0, 0, 0], sizes = [1, 2, 96], strides = [1, 1, 1]} : vector<8x2x96xf32> to vector<1x2x96xf32>
    %22 = vector.shape_cast %21 : vector<1x2x96xf32> to vector<2x96xf32>
    %cst_22 = arith.constant dense<0.000000e+00> : vector<2x96xf32>
    %23 = tpu.matmul %19, %2, %cst_22 {dimension_numbers = #tpu.dot_dimension_numbers<[1], [0], [0], [1], [0, 0, 1, 1], [], []>} : vector<2x32xf32>, vector<32x96xf32>, vector<2x96xf32> -> vector<2x96xf32>
    %24 = vector.broadcast %3 : vector<1x96xf32> to vector<2x96xf32>
    %25 = arith.addf %23, %24 : vector<2x96xf32>
    %26 = vector.extract_strided_slice %22 {offsets = [0, 0], sizes = [2, 64], strides = [1, 1]} : vector<2x96xf32> to vector<2x64xf32>
    %27 = vector.extract_strided_slice %25 {offsets = [0, 0], sizes = [2, 64], strides = [1, 1]} : vector<2x96xf32> to vector<2x64xf32>
    %28 = arith.addf %26, %27 : vector<2x64xf32>
    %29 = arith.negf %28 : vector<2x64xf32>
    %30 = math.exp %29 : vector<2x64xf32>
    %cst_23 = arith.constant 1.000000e+00 : f32
    %31 = vector.broadcast %cst_23 : f32 to vector<2x64xf32>
    %32 = arith.addf %31, %30 : vector<2x64xf32>
    %33 = arith.divf %31, %32 : vector<2x64xf32>
    %34 = vector.extract_strided_slice %33 {offsets = [0, 0], sizes = [2, 32], strides = [1, 1]} : vector<2x64xf32> to vector<2x32xf32>
    %35 = vector.extract_strided_slice %33 {offsets = [0, 32], sizes = [2, 32], strides = [1, 1]} : vector<2x64xf32> to vector<2x32xf32>
    %36 = vector.extract_strided_slice %22 {offsets = [0, 64], sizes = [2, 32], strides = [1, 1]} : vector<2x96xf32> to vector<2x32xf32>
    %37 = vector.extract_strided_slice %25 {offsets = [0, 64], sizes = [2, 32], strides = [1, 1]} : vector<2x96xf32> to vector<2x32xf32>
    %38 = arith.mulf %34, %37 : vector<2x32xf32>
    %39 = arith.addf %36, %38 : vector<2x32xf32>
    %40 = math.tanh %39 : vector<2x32xf32>
    %cst_24 = arith.constant 1.000000e+00 : f32
    %41 = vector.broadcast %cst_24 : f32 to vector<2x32xf32>
    %42 = arith.subf %41, %35 : vector<2x32xf32>
    %43 = arith.mulf %42, %40 : vector<2x32xf32>
    %44 = arith.mulf %35, %19 : vector<2x32xf32>
    %45 = arith.addf %43, %44 : vector<2x32xf32>
    %46 = tpu.concatenate %45, %20 in 1 : vector<2x32xf32>, vector<2x32xf32> -> vector<2x64xf32>
    %cst_25 = arith.constant dense<0.000000e+00> : vector<2x128xf32>
    %47 = tpu.matmul %46, %4, %cst_25 {dimension_numbers = #tpu.dot_dimension_numbers<[1], [0], [0], [1], [0, 0, 1, 1], [], []>} : vector<2x64xf32>, vector<64x128xf32>, vector<2x128xf32> -> vector<2x128xf32>
    %48 = vector.broadcast %5 : vector<1x128xf32> to vector<2x128xf32>
    %49 = arith.addf %47, %48 : vector<2x128xf32>
    %50 = vector.extract_strided_slice %49 {offsets = [0, 0], sizes = [2, 64], strides = [1, 1]} : vector<2x128xf32> to vector<2x64xf32>
    %51 = arith.negf %50 : vector<2x64xf32>
    %52 = math.exp %51 : vector<2x64xf32>
    %cst_26 = arith.constant 1.000000e+00 : f32
    %53 = vector.broadcast %cst_26 : f32 to vector<2x64xf32>
    %54 = arith.addf %53, %52 : vector<2x64xf32>
    %55 = arith.divf %53, %54 : vector<2x64xf32>
    %56 = vector.extract_strided_slice %55 {offsets = [0, 0], sizes = [2, 32], strides = [1, 1]} : vector<2x64xf32> to vector<2x32xf32>
    %57 = vector.extract_strided_slice %55 {offsets = [0, 32], sizes = [2, 32], strides = [1, 1]} : vector<2x64xf32> to vector<2x32xf32>
    %58 = vector.extract_strided_slice %49 {offsets = [0, 64], sizes = [2, 32], strides = [1, 1]} : vector<2x128xf32> to vector<2x32xf32>
    %59 = vector.extract_strided_slice %49 {offsets = [0, 96], sizes = [2, 32], strides = [1, 1]} : vector<2x128xf32> to vector<2x32xf32>
    %60 = arith.mulf %56, %59 : vector<2x32xf32>
    %61 = arith.addf %58, %60 : vector<2x32xf32>
    %62 = math.tanh %61 : vector<2x32xf32>
    %cst_27 = arith.constant 1.000000e+00 : f32
    %63 = vector.broadcast %cst_27 : f32 to vector<2x32xf32>
    %64 = arith.subf %63, %57 : vector<2x32xf32>
    %65 = arith.mulf %64, %62 : vector<2x32xf32>
    %66 = arith.mulf %57, %20 : vector<2x32xf32>
    %67 = arith.addf %65, %66 : vector<2x32xf32>
    %68 = vector.extract_strided_slice %18 {offsets = [1, 0, 0], sizes = [1, 2, 96], strides = [1, 1, 1]} : vector<8x2x96xf32> to vector<1x2x96xf32>
    %69 = vector.shape_cast %68 : vector<1x2x96xf32> to vector<2x96xf32>
    %cst_28 = arith.constant dense<0.000000e+00> : vector<2x96xf32>
    %70 = tpu.matmul %45, %2, %cst_28 {dimension_numbers = #tpu.dot_dimension_numbers<[1], [0], [0], [1], [0, 0, 1, 1], [], []>} : vector<2x32xf32>, vector<32x96xf32>, vector<2x96xf32> -> vector<2x96xf32>
    %71 = vector.broadcast %3 : vector<1x96xf32> to vector<2x96xf32>
    %72 = arith.addf %70, %71 : vector<2x96xf32>
    %73 = vector.extract_strided_slice %69 {offsets = [0, 0], sizes = [2, 64], strides = [1, 1]} : vector<2x96xf32> to vector<2x64xf32>
    %74 = vector.extract_strided_slice %72 {offsets = [0, 0], sizes = [2, 64], strides = [1, 1]} : vector<2x96xf32> to vector<2x64xf32>
    %75 = arith.addf %73, %74 : vector<2x64xf32>
    %76 = arith.negf %75 : vector<2x64xf32>
    %77 = math.exp %76 : vector<2x64xf32>
    %cst_29 = arith.constant 1.000000e+00 : f32
    %78 = vector.broadcast %cst_29 : f32 to vector<2x64xf32>
    %79 = arith.addf %78, %77 : vector<2x64xf32>
    %80 = arith.divf %78, %79 : vector<2x64xf32>
    %81 = vector.extract_strided_slice %80 {offsets = [0, 0], sizes = [2, 32], strides = [1, 1]} : vector<2x64xf32> to vector<2x32xf32>
    %82 = vector.extract_strided_slice %80 {offsets = [0, 32], sizes = [2, 32], strides = [1, 1]} : vector<2x64xf32> to vector<2x32xf32>
    %83 = vector.extract_strided_slice %69 {offsets = [0, 64], sizes = [2, 32], strides = [1, 1]} : vector<2x96xf32> to vector<2x32xf32>
    %84 = vector.extract_strided_slice %72 {offsets = [0, 64], sizes = [2, 32], strides = [1, 1]} : vector<2x96xf32> to vector<2x32xf32>
    %85 = arith.mulf %81, %84 : vector<2x32xf32>
    %86 = arith.addf %83, %85 : vector<2x32xf32>
    %87 = math.tanh %86 : vector<2x32xf32>
    %cst_30 = arith.constant 1.000000e+00 : f32
    %88 = vector.broadcast %cst_30 : f32 to vector<2x32xf32>
    %89 = arith.subf %88, %82 : vector<2x32xf32>
    %90 = arith.mulf %89, %87 : vector<2x32xf32>
    %91 = arith.mulf %82, %45 : vector<2x32xf32>
    %92 = arith.addf %90, %91 : vector<2x32xf32>
    %93 = tpu.concatenate %92, %67 in 1 : vector<2x32xf32>, vector<2x32xf32> -> vector<2x64xf32>
    %cst_31 = arith.constant dense<0.000000e+00> : vector<2x128xf32>
    %94 = tpu.matmul %93, %4, %cst_31 {dimension_numbers = #tpu.dot_dimension_numbers<[1], [0], [0], [1], [0, 0, 1, 1], [], []>} : vector<2x64xf32>, vector<64x128xf32>, vector<2x128xf32> -> vector<2x128xf32>
    %95 = vector.broadcast %5 : vector<1x128xf32> to vector<2x128xf32>
    %96 = arith.addf %94, %95 : vector<2x128xf32>
    %97 = vector.extract_strided_slice %96 {offsets = [0, 0], sizes = [2, 64], strides = [1, 1]} : vector<2x128xf32> to vector<2x64xf32>
    %98 = arith.negf %97 : vector<2x64xf32>
    %99 = math.exp %98 : vector<2x64xf32>
    %cst_32 = arith.constant 1.000000e+00 : f32
    %100 = vector.broadcast %cst_32 : f32 to vector<2x64xf32>
    %101 = arith.addf %100, %99 : vector<2x64xf32>
    %102 = arith.divf %100, %101 : vector<2x64xf32>
    %103 = vector.extract_strided_slice %102 {offsets = [0, 0], sizes = [2, 32], strides = [1, 1]} : vector<2x64xf32> to vector<2x32xf32>
    %104 = vector.extract_strided_slice %102 {offsets = [0, 32], sizes = [2, 32], strides = [1, 1]} : vector<2x64xf32> to vector<2x32xf32>
    %105 = vector.extract_strided_slice %96 {offsets = [0, 64], sizes = [2, 32], strides = [1, 1]} : vector<2x128xf32> to vector<2x32xf32>
    %106 = vector.extract_strided_slice %96 {offsets = [0, 96], sizes = [2, 32], strides = [1, 1]} : vector<2x128xf32> to vector<2x32xf32>
    %107 = arith.mulf %103, %106 : vector<2x32xf32>
    %108 = arith.addf %105, %107 : vector<2x32xf32>
    %109 = math.tanh %108 : vector<2x32xf32>
    %cst_33 = arith.constant 1.000000e+00 : f32
    %110 = vector.broadcast %cst_33 : f32 to vector<2x32xf32>
    %111 = arith.subf %110, %104 : vector<2x32xf32>
    %112 = arith.mulf %111, %109 : vector<2x32xf32>
    %113 = arith.mulf %104, %67 : vector<2x32xf32>
    %114 = arith.addf %112, %113 : vector<2x32xf32>
    %115 = vector.extract_strided_slice %18 {offsets = [2, 0, 0], sizes = [1, 2, 96], strides = [1, 1, 1]} : vector<8x2x96xf32> to vector<1x2x96xf32>
    %116 = vector.shape_cast %115 : vector<1x2x96xf32> to vector<2x96xf32>
    %cst_34 = arith.constant dense<0.000000e+00> : vector<2x96xf32>
    %117 = tpu.matmul %92, %2, %cst_34 {dimension_numbers = #tpu.dot_dimension_numbers<[1], [0], [0], [1], [0, 0, 1, 1], [], []>} : vector<2x32xf32>, vector<32x96xf32>, vector<2x96xf32> -> vector<2x96xf32>
    %118 = vector.broadcast %3 : vector<1x96xf32> to vector<2x96xf32>
    %119 = arith.addf %117, %118 : vector<2x96xf32>
    %120 = vector.extract_strided_slice %116 {offsets = [0, 0], sizes = [2, 64], strides = [1, 1]} : vector<2x96xf32> to vector<2x64xf32>
    %121 = vector.extract_strided_slice %119 {offsets = [0, 0], sizes = [2, 64], strides = [1, 1]} : vector<2x96xf32> to vector<2x64xf32>
    %122 = arith.addf %120, %121 : vector<2x64xf32>
    %123 = arith.negf %122 : vector<2x64xf32>
    %124 = math.exp %123 : vector<2x64xf32>
    %cst_35 = arith.constant 1.000000e+00 : f32
    %125 = vector.broadcast %cst_35 : f32 to vector<2x64xf32>
    %126 = arith.addf %125, %124 : vector<2x64xf32>
    %127 = arith.divf %125, %126 : vector<2x64xf32>
    %128 = vector.extract_strided_slice %127 {offsets = [0, 0], sizes = [2, 32], strides = [1, 1]} : vector<2x64xf32> to vector<2x32xf32>
    %129 = vector.extract_strided_slice %127 {offsets = [0, 32], sizes = [2, 32], strides = [1, 1]} : vector<2x64xf32> to vector<2x32xf32>
    %130 = vector.extract_strided_slice %116 {offsets = [0, 64], sizes = [2, 32], strides = [1, 1]} : vector<2x96xf32> to vector<2x32xf32>
    %131 = vector.extract_strided_slice %119 {offsets = [0, 64], sizes = [2, 32], strides = [1, 1]} : vector<2x96xf32> to vector<2x32xf32>
    %132 = arith.mulf %128, %131 : vector<2x32xf32>
    %133 = arith.addf %130, %132 : vector<2x32xf32>
    %134 = math.tanh %133 : vector<2x32xf32>
    %cst_36 = arith.constant 1.000000e+00 : f32
    %135 = vector.broadcast %cst_36 : f32 to vector<2x32xf32>
    %136 = arith.subf %135, %129 : vector<2x32xf32>
    %137 = arith.mulf %136, %134 : vector<2x32xf32>
    %138 = arith.mulf %129, %92 : vector<2x32xf32>
    %139 = arith.addf %137, %138 : vector<2x32xf32>
    %140 = tpu.concatenate %139, %114 in 1 : vector<2x32xf32>, vector<2x32xf32> -> vector<2x64xf32>
    %cst_37 = arith.constant dense<0.000000e+00> : vector<2x128xf32>
    %141 = tpu.matmul %140, %4, %cst_37 {dimension_numbers = #tpu.dot_dimension_numbers<[1], [0], [0], [1], [0, 0, 1, 1], [], []>} : vector<2x64xf32>, vector<64x128xf32>, vector<2x128xf32> -> vector<2x128xf32>
    %142 = vector.broadcast %5 : vector<1x128xf32> to vector<2x128xf32>
    %143 = arith.addf %141, %142 : vector<2x128xf32>
    %144 = vector.extract_strided_slice %143 {offsets = [0, 0], sizes = [2, 64], strides = [1, 1]} : vector<2x128xf32> to vector<2x64xf32>
    %145 = arith.negf %144 : vector<2x64xf32>
    %146 = math.exp %145 : vector<2x64xf32>
    %cst_38 = arith.constant 1.000000e+00 : f32
    %147 = vector.broadcast %cst_38 : f32 to vector<2x64xf32>
    %148 = arith.addf %147, %146 : vector<2x64xf32>
    %149 = arith.divf %147, %148 : vector<2x64xf32>
    %150 = vector.extract_strided_slice %149 {offsets = [0, 0], sizes = [2, 32], strides = [1, 1]} : vector<2x64xf32> to vector<2x32xf32>
    %151 = vector.extract_strided_slice %149 {offsets = [0, 32], sizes = [2, 32], strides = [1, 1]} : vector<2x64xf32> to vector<2x32xf32>
    %152 = vector.extract_strided_slice %143 {offsets = [0, 64], sizes = [2, 32], strides = [1, 1]} : vector<2x128xf32> to vector<2x32xf32>
    %153 = vector.extract_strided_slice %143 {offsets = [0, 96], sizes = [2, 32], strides = [1, 1]} : vector<2x128xf32> to vector<2x32xf32>
    %154 = arith.mulf %150, %153 : vector<2x32xf32>
    %155 = arith.addf %152, %154 : vector<2x32xf32>
    %156 = math.tanh %155 : vector<2x32xf32>
    %cst_39 = arith.constant 1.000000e+00 : f32
    %157 = vector.broadcast %cst_39 : f32 to vector<2x32xf32>
    %158 = arith.subf %157, %151 : vector<2x32xf32>
    %159 = arith.mulf %158, %156 : vector<2x32xf32>
    %160 = arith.mulf %151, %114 : vector<2x32xf32>
    %161 = arith.addf %159, %160 : vector<2x32xf32>
    %162 = vector.extract_strided_slice %18 {offsets = [3, 0, 0], sizes = [1, 2, 96], strides = [1, 1, 1]} : vector<8x2x96xf32> to vector<1x2x96xf32>
    %163 = vector.shape_cast %162 : vector<1x2x96xf32> to vector<2x96xf32>
    %cst_40 = arith.constant dense<0.000000e+00> : vector<2x96xf32>
    %164 = tpu.matmul %139, %2, %cst_40 {dimension_numbers = #tpu.dot_dimension_numbers<[1], [0], [0], [1], [0, 0, 1, 1], [], []>} : vector<2x32xf32>, vector<32x96xf32>, vector<2x96xf32> -> vector<2x96xf32>
    %165 = vector.broadcast %3 : vector<1x96xf32> to vector<2x96xf32>
    %166 = arith.addf %164, %165 : vector<2x96xf32>
    %167 = vector.extract_strided_slice %163 {offsets = [0, 0], sizes = [2, 64], strides = [1, 1]} : vector<2x96xf32> to vector<2x64xf32>
    %168 = vector.extract_strided_slice %166 {offsets = [0, 0], sizes = [2, 64], strides = [1, 1]} : vector<2x96xf32> to vector<2x64xf32>
    %169 = arith.addf %167, %168 : vector<2x64xf32>
    %170 = arith.negf %169 : vector<2x64xf32>
    %171 = math.exp %170 : vector<2x64xf32>
    %cst_41 = arith.constant 1.000000e+00 : f32
    %172 = vector.broadcast %cst_41 : f32 to vector<2x64xf32>
    %173 = arith.addf %172, %171 : vector<2x64xf32>
    %174 = arith.divf %172, %173 : vector<2x64xf32>
    %175 = vector.extract_strided_slice %174 {offsets = [0, 0], sizes = [2, 32], strides = [1, 1]} : vector<2x64xf32> to vector<2x32xf32>
    %176 = vector.extract_strided_slice %174 {offsets = [0, 32], sizes = [2, 32], strides = [1, 1]} : vector<2x64xf32> to vector<2x32xf32>
    %177 = vector.extract_strided_slice %163 {offsets = [0, 64], sizes = [2, 32], strides = [1, 1]} : vector<2x96xf32> to vector<2x32xf32>
    %178 = vector.extract_strided_slice %166 {offsets = [0, 64], sizes = [2, 32], strides = [1, 1]} : vector<2x96xf32> to vector<2x32xf32>
    %179 = arith.mulf %175, %178 : vector<2x32xf32>
    %180 = arith.addf %177, %179 : vector<2x32xf32>
    %181 = math.tanh %180 : vector<2x32xf32>
    %cst_42 = arith.constant 1.000000e+00 : f32
    %182 = vector.broadcast %cst_42 : f32 to vector<2x32xf32>
    %183 = arith.subf %182, %176 : vector<2x32xf32>
    %184 = arith.mulf %183, %181 : vector<2x32xf32>
    %185 = arith.mulf %176, %139 : vector<2x32xf32>
    %186 = arith.addf %184, %185 : vector<2x32xf32>
    %187 = tpu.concatenate %186, %161 in 1 : vector<2x32xf32>, vector<2x32xf32> -> vector<2x64xf32>
    %cst_43 = arith.constant dense<0.000000e+00> : vector<2x128xf32>
    %188 = tpu.matmul %187, %4, %cst_43 {dimension_numbers = #tpu.dot_dimension_numbers<[1], [0], [0], [1], [0, 0, 1, 1], [], []>} : vector<2x64xf32>, vector<64x128xf32>, vector<2x128xf32> -> vector<2x128xf32>
    %189 = vector.broadcast %5 : vector<1x128xf32> to vector<2x128xf32>
    %190 = arith.addf %188, %189 : vector<2x128xf32>
    %191 = vector.extract_strided_slice %190 {offsets = [0, 0], sizes = [2, 64], strides = [1, 1]} : vector<2x128xf32> to vector<2x64xf32>
    %192 = arith.negf %191 : vector<2x64xf32>
    %193 = math.exp %192 : vector<2x64xf32>
    %cst_44 = arith.constant 1.000000e+00 : f32
    %194 = vector.broadcast %cst_44 : f32 to vector<2x64xf32>
    %195 = arith.addf %194, %193 : vector<2x64xf32>
    %196 = arith.divf %194, %195 : vector<2x64xf32>
    %197 = vector.extract_strided_slice %196 {offsets = [0, 0], sizes = [2, 32], strides = [1, 1]} : vector<2x64xf32> to vector<2x32xf32>
    %198 = vector.extract_strided_slice %196 {offsets = [0, 32], sizes = [2, 32], strides = [1, 1]} : vector<2x64xf32> to vector<2x32xf32>
    %199 = vector.extract_strided_slice %190 {offsets = [0, 64], sizes = [2, 32], strides = [1, 1]} : vector<2x128xf32> to vector<2x32xf32>
    %200 = vector.extract_strided_slice %190 {offsets = [0, 96], sizes = [2, 32], strides = [1, 1]} : vector<2x128xf32> to vector<2x32xf32>
    %201 = arith.mulf %197, %200 : vector<2x32xf32>
    %202 = arith.addf %199, %201 : vector<2x32xf32>
    %203 = math.tanh %202 : vector<2x32xf32>
    %cst_45 = arith.constant 1.000000e+00 : f32
    %204 = vector.broadcast %cst_45 : f32 to vector<2x32xf32>
    %205 = arith.subf %204, %198 : vector<2x32xf32>
    %206 = arith.mulf %205, %203 : vector<2x32xf32>
    %207 = arith.mulf %198, %161 : vector<2x32xf32>
    %208 = arith.addf %206, %207 : vector<2x32xf32>
    %209 = vector.extract_strided_slice %18 {offsets = [4, 0, 0], sizes = [1, 2, 96], strides = [1, 1, 1]} : vector<8x2x96xf32> to vector<1x2x96xf32>
    %210 = vector.shape_cast %209 : vector<1x2x96xf32> to vector<2x96xf32>
    %cst_46 = arith.constant dense<0.000000e+00> : vector<2x96xf32>
    %211 = tpu.matmul %186, %2, %cst_46 {dimension_numbers = #tpu.dot_dimension_numbers<[1], [0], [0], [1], [0, 0, 1, 1], [], []>} : vector<2x32xf32>, vector<32x96xf32>, vector<2x96xf32> -> vector<2x96xf32>
    %212 = vector.broadcast %3 : vector<1x96xf32> to vector<2x96xf32>
    %213 = arith.addf %211, %212 : vector<2x96xf32>
    %214 = vector.extract_strided_slice %210 {offsets = [0, 0], sizes = [2, 64], strides = [1, 1]} : vector<2x96xf32> to vector<2x64xf32>
    %215 = vector.extract_strided_slice %213 {offsets = [0, 0], sizes = [2, 64], strides = [1, 1]} : vector<2x96xf32> to vector<2x64xf32>
    %216 = arith.addf %214, %215 : vector<2x64xf32>
    %217 = arith.negf %216 : vector<2x64xf32>
    %218 = math.exp %217 : vector<2x64xf32>
    %cst_47 = arith.constant 1.000000e+00 : f32
    %219 = vector.broadcast %cst_47 : f32 to vector<2x64xf32>
    %220 = arith.addf %219, %218 : vector<2x64xf32>
    %221 = arith.divf %219, %220 : vector<2x64xf32>
    %222 = vector.extract_strided_slice %221 {offsets = [0, 0], sizes = [2, 32], strides = [1, 1]} : vector<2x64xf32> to vector<2x32xf32>
    %223 = vector.extract_strided_slice %221 {offsets = [0, 32], sizes = [2, 32], strides = [1, 1]} : vector<2x64xf32> to vector<2x32xf32>
    %224 = vector.extract_strided_slice %210 {offsets = [0, 64], sizes = [2, 32], strides = [1, 1]} : vector<2x96xf32> to vector<2x32xf32>
    %225 = vector.extract_strided_slice %213 {offsets = [0, 64], sizes = [2, 32], strides = [1, 1]} : vector<2x96xf32> to vector<2x32xf32>
    %226 = arith.mulf %222, %225 : vector<2x32xf32>
    %227 = arith.addf %224, %226 : vector<2x32xf32>
    %228 = math.tanh %227 : vector<2x32xf32>
    %cst_48 = arith.constant 1.000000e+00 : f32
    %229 = vector.broadcast %cst_48 : f32 to vector<2x32xf32>
    %230 = arith.subf %229, %223 : vector<2x32xf32>
    %231 = arith.mulf %230, %228 : vector<2x32xf32>
    %232 = arith.mulf %223, %186 : vector<2x32xf32>
    %233 = arith.addf %231, %232 : vector<2x32xf32>
    %234 = tpu.concatenate %233, %208 in 1 : vector<2x32xf32>, vector<2x32xf32> -> vector<2x64xf32>
    %cst_49 = arith.constant dense<0.000000e+00> : vector<2x128xf32>
    %235 = tpu.matmul %234, %4, %cst_49 {dimension_numbers = #tpu.dot_dimension_numbers<[1], [0], [0], [1], [0, 0, 1, 1], [], []>} : vector<2x64xf32>, vector<64x128xf32>, vector<2x128xf32> -> vector<2x128xf32>
    %236 = vector.broadcast %5 : vector<1x128xf32> to vector<2x128xf32>
    %237 = arith.addf %235, %236 : vector<2x128xf32>
    %238 = vector.extract_strided_slice %237 {offsets = [0, 0], sizes = [2, 64], strides = [1, 1]} : vector<2x128xf32> to vector<2x64xf32>
    %239 = arith.negf %238 : vector<2x64xf32>
    %240 = math.exp %239 : vector<2x64xf32>
    %cst_50 = arith.constant 1.000000e+00 : f32
    %241 = vector.broadcast %cst_50 : f32 to vector<2x64xf32>
    %242 = arith.addf %241, %240 : vector<2x64xf32>
    %243 = arith.divf %241, %242 : vector<2x64xf32>
    %244 = vector.extract_strided_slice %243 {offsets = [0, 0], sizes = [2, 32], strides = [1, 1]} : vector<2x64xf32> to vector<2x32xf32>
    %245 = vector.extract_strided_slice %243 {offsets = [0, 32], sizes = [2, 32], strides = [1, 1]} : vector<2x64xf32> to vector<2x32xf32>
    %246 = vector.extract_strided_slice %237 {offsets = [0, 64], sizes = [2, 32], strides = [1, 1]} : vector<2x128xf32> to vector<2x32xf32>
    %247 = vector.extract_strided_slice %237 {offsets = [0, 96], sizes = [2, 32], strides = [1, 1]} : vector<2x128xf32> to vector<2x32xf32>
    %248 = arith.mulf %244, %247 : vector<2x32xf32>
    %249 = arith.addf %246, %248 : vector<2x32xf32>
    %250 = math.tanh %249 : vector<2x32xf32>
    %cst_51 = arith.constant 1.000000e+00 : f32
    %251 = vector.broadcast %cst_51 : f32 to vector<2x32xf32>
    %252 = arith.subf %251, %245 : vector<2x32xf32>
    %253 = arith.mulf %252, %250 : vector<2x32xf32>
    %254 = arith.mulf %245, %208 : vector<2x32xf32>
    %255 = arith.addf %253, %254 : vector<2x32xf32>
    %256 = vector.extract_strided_slice %18 {offsets = [5, 0, 0], sizes = [1, 2, 96], strides = [1, 1, 1]} : vector<8x2x96xf32> to vector<1x2x96xf32>
    %257 = vector.shape_cast %256 : vector<1x2x96xf32> to vector<2x96xf32>
    %cst_52 = arith.constant dense<0.000000e+00> : vector<2x96xf32>
    %258 = tpu.matmul %233, %2, %cst_52 {dimension_numbers = #tpu.dot_dimension_numbers<[1], [0], [0], [1], [0, 0, 1, 1], [], []>} : vector<2x32xf32>, vector<32x96xf32>, vector<2x96xf32> -> vector<2x96xf32>
    %259 = vector.broadcast %3 : vector<1x96xf32> to vector<2x96xf32>
    %260 = arith.addf %258, %259 : vector<2x96xf32>
    %261 = vector.extract_strided_slice %257 {offsets = [0, 0], sizes = [2, 64], strides = [1, 1]} : vector<2x96xf32> to vector<2x64xf32>
    %262 = vector.extract_strided_slice %260 {offsets = [0, 0], sizes = [2, 64], strides = [1, 1]} : vector<2x96xf32> to vector<2x64xf32>
    %263 = arith.addf %261, %262 : vector<2x64xf32>
    %264 = arith.negf %263 : vector<2x64xf32>
    %265 = math.exp %264 : vector<2x64xf32>
    %cst_53 = arith.constant 1.000000e+00 : f32
    %266 = vector.broadcast %cst_53 : f32 to vector<2x64xf32>
    %267 = arith.addf %266, %265 : vector<2x64xf32>
    %268 = arith.divf %266, %267 : vector<2x64xf32>
    %269 = vector.extract_strided_slice %268 {offsets = [0, 0], sizes = [2, 32], strides = [1, 1]} : vector<2x64xf32> to vector<2x32xf32>
    %270 = vector.extract_strided_slice %268 {offsets = [0, 32], sizes = [2, 32], strides = [1, 1]} : vector<2x64xf32> to vector<2x32xf32>
    %271 = vector.extract_strided_slice %257 {offsets = [0, 64], sizes = [2, 32], strides = [1, 1]} : vector<2x96xf32> to vector<2x32xf32>
    %272 = vector.extract_strided_slice %260 {offsets = [0, 64], sizes = [2, 32], strides = [1, 1]} : vector<2x96xf32> to vector<2x32xf32>
    %273 = arith.mulf %269, %272 : vector<2x32xf32>
    %274 = arith.addf %271, %273 : vector<2x32xf32>
    %275 = math.tanh %274 : vector<2x32xf32>
    %cst_54 = arith.constant 1.000000e+00 : f32
    %276 = vector.broadcast %cst_54 : f32 to vector<2x32xf32>
    %277 = arith.subf %276, %270 : vector<2x32xf32>
    %278 = arith.mulf %277, %275 : vector<2x32xf32>
    %279 = arith.mulf %270, %233 : vector<2x32xf32>
    %280 = arith.addf %278, %279 : vector<2x32xf32>
    %281 = tpu.concatenate %280, %255 in 1 : vector<2x32xf32>, vector<2x32xf32> -> vector<2x64xf32>
    %cst_55 = arith.constant dense<0.000000e+00> : vector<2x128xf32>
    %282 = tpu.matmul %281, %4, %cst_55 {dimension_numbers = #tpu.dot_dimension_numbers<[1], [0], [0], [1], [0, 0, 1, 1], [], []>} : vector<2x64xf32>, vector<64x128xf32>, vector<2x128xf32> -> vector<2x128xf32>
    %283 = vector.broadcast %5 : vector<1x128xf32> to vector<2x128xf32>
    %284 = arith.addf %282, %283 : vector<2x128xf32>
    %285 = vector.extract_strided_slice %284 {offsets = [0, 0], sizes = [2, 64], strides = [1, 1]} : vector<2x128xf32> to vector<2x64xf32>
    %286 = arith.negf %285 : vector<2x64xf32>
    %287 = math.exp %286 : vector<2x64xf32>
    %cst_56 = arith.constant 1.000000e+00 : f32
    %288 = vector.broadcast %cst_56 : f32 to vector<2x64xf32>
    %289 = arith.addf %288, %287 : vector<2x64xf32>
    %290 = arith.divf %288, %289 : vector<2x64xf32>
    %291 = vector.extract_strided_slice %290 {offsets = [0, 0], sizes = [2, 32], strides = [1, 1]} : vector<2x64xf32> to vector<2x32xf32>
    %292 = vector.extract_strided_slice %290 {offsets = [0, 32], sizes = [2, 32], strides = [1, 1]} : vector<2x64xf32> to vector<2x32xf32>
    %293 = vector.extract_strided_slice %284 {offsets = [0, 64], sizes = [2, 32], strides = [1, 1]} : vector<2x128xf32> to vector<2x32xf32>
    %294 = vector.extract_strided_slice %284 {offsets = [0, 96], sizes = [2, 32], strides = [1, 1]} : vector<2x128xf32> to vector<2x32xf32>
    %295 = arith.mulf %291, %294 : vector<2x32xf32>
    %296 = arith.addf %293, %295 : vector<2x32xf32>
    %297 = math.tanh %296 : vector<2x32xf32>
    %cst_57 = arith.constant 1.000000e+00 : f32
    %298 = vector.broadcast %cst_57 : f32 to vector<2x32xf32>
    %299 = arith.subf %298, %292 : vector<2x32xf32>
    %300 = arith.mulf %299, %297 : vector<2x32xf32>
    %301 = arith.mulf %292, %255 : vector<2x32xf32>
    %302 = arith.addf %300, %301 : vector<2x32xf32>
    %303 = vector.extract_strided_slice %18 {offsets = [6, 0, 0], sizes = [1, 2, 96], strides = [1, 1, 1]} : vector<8x2x96xf32> to vector<1x2x96xf32>
    %304 = vector.shape_cast %303 : vector<1x2x96xf32> to vector<2x96xf32>
    %cst_58 = arith.constant dense<0.000000e+00> : vector<2x96xf32>
    %305 = tpu.matmul %280, %2, %cst_58 {dimension_numbers = #tpu.dot_dimension_numbers<[1], [0], [0], [1], [0, 0, 1, 1], [], []>} : vector<2x32xf32>, vector<32x96xf32>, vector<2x96xf32> -> vector<2x96xf32>
    %306 = vector.broadcast %3 : vector<1x96xf32> to vector<2x96xf32>
    %307 = arith.addf %305, %306 : vector<2x96xf32>
    %308 = vector.extract_strided_slice %304 {offsets = [0, 0], sizes = [2, 64], strides = [1, 1]} : vector<2x96xf32> to vector<2x64xf32>
    %309 = vector.extract_strided_slice %307 {offsets = [0, 0], sizes = [2, 64], strides = [1, 1]} : vector<2x96xf32> to vector<2x64xf32>
    %310 = arith.addf %308, %309 : vector<2x64xf32>
    %311 = arith.negf %310 : vector<2x64xf32>
    %312 = math.exp %311 : vector<2x64xf32>
    %cst_59 = arith.constant 1.000000e+00 : f32
    %313 = vector.broadcast %cst_59 : f32 to vector<2x64xf32>
    %314 = arith.addf %313, %312 : vector<2x64xf32>
    %315 = arith.divf %313, %314 : vector<2x64xf32>
    %316 = vector.extract_strided_slice %315 {offsets = [0, 0], sizes = [2, 32], strides = [1, 1]} : vector<2x64xf32> to vector<2x32xf32>
    %317 = vector.extract_strided_slice %315 {offsets = [0, 32], sizes = [2, 32], strides = [1, 1]} : vector<2x64xf32> to vector<2x32xf32>
    %318 = vector.extract_strided_slice %304 {offsets = [0, 64], sizes = [2, 32], strides = [1, 1]} : vector<2x96xf32> to vector<2x32xf32>
    %319 = vector.extract_strided_slice %307 {offsets = [0, 64], sizes = [2, 32], strides = [1, 1]} : vector<2x96xf32> to vector<2x32xf32>
    %320 = arith.mulf %316, %319 : vector<2x32xf32>
    %321 = arith.addf %318, %320 : vector<2x32xf32>
    %322 = math.tanh %321 : vector<2x32xf32>
    %cst_60 = arith.constant 1.000000e+00 : f32
    %323 = vector.broadcast %cst_60 : f32 to vector<2x32xf32>
    %324 = arith.subf %323, %317 : vector<2x32xf32>
    %325 = arith.mulf %324, %322 : vector<2x32xf32>
    %326 = arith.mulf %317, %280 : vector<2x32xf32>
    %327 = arith.addf %325, %326 : vector<2x32xf32>
    %328 = tpu.concatenate %327, %302 in 1 : vector<2x32xf32>, vector<2x32xf32> -> vector<2x64xf32>
    %cst_61 = arith.constant dense<0.000000e+00> : vector<2x128xf32>
    %329 = tpu.matmul %328, %4, %cst_61 {dimension_numbers = #tpu.dot_dimension_numbers<[1], [0], [0], [1], [0, 0, 1, 1], [], []>} : vector<2x64xf32>, vector<64x128xf32>, vector<2x128xf32> -> vector<2x128xf32>
    %330 = vector.broadcast %5 : vector<1x128xf32> to vector<2x128xf32>
    %331 = arith.addf %329, %330 : vector<2x128xf32>
    %332 = vector.extract_strided_slice %331 {offsets = [0, 0], sizes = [2, 64], strides = [1, 1]} : vector<2x128xf32> to vector<2x64xf32>
    %333 = arith.negf %332 : vector<2x64xf32>
    %334 = math.exp %333 : vector<2x64xf32>
    %cst_62 = arith.constant 1.000000e+00 : f32
    %335 = vector.broadcast %cst_62 : f32 to vector<2x64xf32>
    %336 = arith.addf %335, %334 : vector<2x64xf32>
    %337 = arith.divf %335, %336 : vector<2x64xf32>
    %338 = vector.extract_strided_slice %337 {offsets = [0, 0], sizes = [2, 32], strides = [1, 1]} : vector<2x64xf32> to vector<2x32xf32>
    %339 = vector.extract_strided_slice %337 {offsets = [0, 32], sizes = [2, 32], strides = [1, 1]} : vector<2x64xf32> to vector<2x32xf32>
    %340 = vector.extract_strided_slice %331 {offsets = [0, 64], sizes = [2, 32], strides = [1, 1]} : vector<2x128xf32> to vector<2x32xf32>
    %341 = vector.extract_strided_slice %331 {offsets = [0, 96], sizes = [2, 32], strides = [1, 1]} : vector<2x128xf32> to vector<2x32xf32>
    %342 = arith.mulf %338, %341 : vector<2x32xf32>
    %343 = arith.addf %340, %342 : vector<2x32xf32>
    %344 = math.tanh %343 : vector<2x32xf32>
    %cst_63 = arith.constant 1.000000e+00 : f32
    %345 = vector.broadcast %cst_63 : f32 to vector<2x32xf32>
    %346 = arith.subf %345, %339 : vector<2x32xf32>
    %347 = arith.mulf %346, %344 : vector<2x32xf32>
    %348 = arith.mulf %339, %302 : vector<2x32xf32>
    %349 = arith.addf %347, %348 : vector<2x32xf32>
    %350 = vector.extract_strided_slice %18 {offsets = [7, 0, 0], sizes = [1, 2, 96], strides = [1, 1, 1]} : vector<8x2x96xf32> to vector<1x2x96xf32>
    %351 = vector.shape_cast %350 : vector<1x2x96xf32> to vector<2x96xf32>
    %cst_64 = arith.constant dense<0.000000e+00> : vector<2x96xf32>
    %352 = tpu.matmul %327, %2, %cst_64 {dimension_numbers = #tpu.dot_dimension_numbers<[1], [0], [0], [1], [0, 0, 1, 1], [], []>} : vector<2x32xf32>, vector<32x96xf32>, vector<2x96xf32> -> vector<2x96xf32>
    %353 = vector.broadcast %3 : vector<1x96xf32> to vector<2x96xf32>
    %354 = arith.addf %352, %353 : vector<2x96xf32>
    %355 = vector.extract_strided_slice %351 {offsets = [0, 0], sizes = [2, 64], strides = [1, 1]} : vector<2x96xf32> to vector<2x64xf32>
    %356 = vector.extract_strided_slice %354 {offsets = [0, 0], sizes = [2, 64], strides = [1, 1]} : vector<2x96xf32> to vector<2x64xf32>
    %357 = arith.addf %355, %356 : vector<2x64xf32>
    %358 = arith.negf %357 : vector<2x64xf32>
    %359 = math.exp %358 : vector<2x64xf32>
    %cst_65 = arith.constant 1.000000e+00 : f32
    %360 = vector.broadcast %cst_65 : f32 to vector<2x64xf32>
    %361 = arith.addf %360, %359 : vector<2x64xf32>
    %362 = arith.divf %360, %361 : vector<2x64xf32>
    %363 = vector.extract_strided_slice %362 {offsets = [0, 0], sizes = [2, 32], strides = [1, 1]} : vector<2x64xf32> to vector<2x32xf32>
    %364 = vector.extract_strided_slice %362 {offsets = [0, 32], sizes = [2, 32], strides = [1, 1]} : vector<2x64xf32> to vector<2x32xf32>
    %365 = vector.extract_strided_slice %351 {offsets = [0, 64], sizes = [2, 32], strides = [1, 1]} : vector<2x96xf32> to vector<2x32xf32>
    %366 = vector.extract_strided_slice %354 {offsets = [0, 64], sizes = [2, 32], strides = [1, 1]} : vector<2x96xf32> to vector<2x32xf32>
    %367 = arith.mulf %363, %366 : vector<2x32xf32>
    %368 = arith.addf %365, %367 : vector<2x32xf32>
    %369 = math.tanh %368 : vector<2x32xf32>
    %cst_66 = arith.constant 1.000000e+00 : f32
    %370 = vector.broadcast %cst_66 : f32 to vector<2x32xf32>
    %371 = arith.subf %370, %364 : vector<2x32xf32>
    %372 = arith.mulf %371, %369 : vector<2x32xf32>
    %373 = arith.mulf %364, %327 : vector<2x32xf32>
    %374 = arith.addf %372, %373 : vector<2x32xf32>
    %375 = tpu.concatenate %374, %349 in 1 : vector<2x32xf32>, vector<2x32xf32> -> vector<2x64xf32>
    %cst_67 = arith.constant dense<0.000000e+00> : vector<2x128xf32>
    %376 = tpu.matmul %375, %4, %cst_67 {dimension_numbers = #tpu.dot_dimension_numbers<[1], [0], [0], [1], [0, 0, 1, 1], [], []>} : vector<2x64xf32>, vector<64x128xf32>, vector<2x128xf32> -> vector<2x128xf32>
    %377 = vector.broadcast %5 : vector<1x128xf32> to vector<2x128xf32>
    %378 = arith.addf %376, %377 : vector<2x128xf32>
    %379 = vector.extract_strided_slice %378 {offsets = [0, 0], sizes = [2, 64], strides = [1, 1]} : vector<2x128xf32> to vector<2x64xf32>
    %380 = arith.negf %379 : vector<2x64xf32>
    %381 = math.exp %380 : vector<2x64xf32>
    %cst_68 = arith.constant 1.000000e+00 : f32
    %382 = vector.broadcast %cst_68 : f32 to vector<2x64xf32>
    %383 = arith.addf %382, %381 : vector<2x64xf32>
    %384 = arith.divf %382, %383 : vector<2x64xf32>
    %385 = vector.extract_strided_slice %384 {offsets = [0, 0], sizes = [2, 32], strides = [1, 1]} : vector<2x64xf32> to vector<2x32xf32>
    %386 = vector.extract_strided_slice %384 {offsets = [0, 32], sizes = [2, 32], strides = [1, 1]} : vector<2x64xf32> to vector<2x32xf32>
    %387 = vector.extract_strided_slice %378 {offsets = [0, 64], sizes = [2, 32], strides = [1, 1]} : vector<2x128xf32> to vector<2x32xf32>
    %388 = vector.extract_strided_slice %378 {offsets = [0, 96], sizes = [2, 32], strides = [1, 1]} : vector<2x128xf32> to vector<2x32xf32>
    %389 = arith.mulf %385, %388 : vector<2x32xf32>
    %390 = arith.addf %387, %389 : vector<2x32xf32>
    %391 = math.tanh %390 : vector<2x32xf32>
    %cst_69 = arith.constant 1.000000e+00 : f32
    %392 = vector.broadcast %cst_69 : f32 to vector<2x32xf32>
    %393 = arith.subf %392, %386 : vector<2x32xf32>
    %394 = arith.mulf %393, %391 : vector<2x32xf32>
    %395 = arith.mulf %386, %349 : vector<2x32xf32>
    %396 = arith.addf %394, %395 : vector<2x32xf32>
    %cst_70 = arith.constant dense<0.000000e+00> : vector<2x32xf32>
    %397 = tpu.matmul %396, %6, %cst_70 {dimension_numbers = #tpu.dot_dimension_numbers<[1], [0], [0], [1], [0, 0, 1, 1], [], []>} : vector<2x32xf32>, vector<32x32xf32>, vector<2x32xf32> -> vector<2x32xf32>
    %398 = vector.broadcast %7 : vector<1x32xf32> to vector<2x32xf32>
    %399 = arith.addf %397, %398 : vector<2x32xf32>
    %cst_71 = arith.constant 0.000000e+00 : f32
    %400 = vector.broadcast %cst_71 : f32 to vector<2x32xf32>
    %401 = arith.maximumf %399, %400 : vector<2x32xf32>
    %cst_72 = arith.constant dense<0.000000e+00> : vector<2x4xf32>
    %402 = tpu.matmul %401, %8, %cst_72 {dimension_numbers = #tpu.dot_dimension_numbers<[1], [0], [0], [1], [0, 0, 1, 1], [], []>} : vector<2x32xf32>, vector<32x4xf32>, vector<2x4xf32> -> vector<2x4xf32>
    %403 = vector.broadcast %9 : vector<1x4xf32> to vector<2x4xf32>
    %404 = arith.addf %402, %403 : vector<2x4xf32>
    %405 = arith.negf %404 : vector<2x4xf32>
    %406 = math.exp %405 : vector<2x4xf32>
    %cst_73 = arith.constant 1.000000e+00 : f32
    %407 = vector.broadcast %cst_73 : f32 to vector<2x4xf32>
    %408 = arith.addf %407, %406 : vector<2x4xf32>
    %409 = arith.divf %407, %408 : vector<2x4xf32>
    %c0_74 = arith.constant 0 : index
    %c0_75 = arith.constant 0 : index
    %410 = vector.load %arg11[%c0_74, %c0_75] : memref<2x4xf32, #tpu.memory_space<vmem>>, vector<2x4xf32>
    tpu.vector_store %arg11[%c0_74, %c0_75], %409 {strides = array<i32>} : memref<2x4xf32, #tpu.memory_space<vmem>>, vector<2x4xf32>,
    return
  }
}

</mosaic_0001>

<llo_original>
// kernel: tpu_custom_call.1
$region0: #{tpu_custom_call.1}
  #allocation0 [shape = 'u32[]', space=smem, size = 0x4, offset = 0x4, fixed_abs, tag = 'smem constant byte address 0x4 - core index']
  #allocation1 [shape = 'u32[144,128]{1,0:T(1,128)}', space=vmem, size = 0x12000, scoped, tag = 'internal scratch']
  %s0 = inlined_call_operand.vmem [shape: f32[8,2], index: 0, kind: input, shape index: {}]
  %s1 = inlined_call_operand.hbm [shape: f32[1,96], index: 1, kind: input, shape index: {}]
  %s2 = inlined_call_operand.hbm [shape: f32[1,96], index: 2, kind: input, shape index: {}]
  %s3 = inlined_call_operand.hbm [shape: f32[32,96], index: 3, kind: input, shape index: {}]
  %s4 = inlined_call_operand.hbm [shape: f32[1,96], index: 4, kind: input, shape index: {}]
  %s5 = inlined_call_operand.vmem [shape: f32[64,128], index: 5, kind: input, shape index: {}]
  %s6 = inlined_call_operand.hbm [shape: f32[1,128], index: 6, kind: input, shape index: {}]
  %s7 = inlined_call_operand.hbm [shape: f32[32,32], index: 7, kind: input, shape index: {}]
  %s8 = inlined_call_operand.vmem [shape: f32[1,32], index: 8, kind: input, shape index: {}]
  %s9 = inlined_call_operand.vmem [shape: f32[32,4], index: 9, kind: input, shape index: {}]
  %s10 = inlined_call_operand.vmem [shape: f32[1,4], index: 10, kind: input, shape index: {}]
  %s11 = inlined_call_operand.hbm [shape: f32[2,4], index: 11, kind: output, shape index: {}]
  %s12 = sld [smem:[#allocation0]]
  $region78: #{tpu_custom_call.1} parent=0
    _
  %s14 = ssub.s32 1, %s12
  %s15 = scalar_select 0, %s14, %s12
  $region1: #{tpu_custom_call.1} parent=0
    #allocation2 [shape = 'u8[512]{0}', space=vmem, size = 0x400, scoped, tag = 'input window, operand 1, single buffered']
    #allocation3 [shape = 's32[1]{0}', space=sflag, size = 0x4, scoped, tag = 'scoped memory for tpu_custom_call.1']
    #allocation4 [shape = 's32[1]{0}', space=sflag, size = 0x4, scoped, tag = 'scoped memory for tpu_custom_call.1']
    #allocation5 [shape = 'u8[512]{0}', space=vmem, size = 0x400, scoped, tag = 'input window, operand 2, single buffered']
    #allocation6 [shape = 's32[1]{0}', space=sflag, size = 0x4, scoped, tag = 'scoped memory for tpu_custom_call.1']
    #allocation7 [shape = 'u8[16384]{0}', space=vmem, size = 0x4000, scoped, tag = 'input window, operand 3, single buffered']
    #allocation8 [shape = 'u8[512]{0}', space=vmem, size = 0x400, scoped, tag = 'input window, operand 4, single buffered']
    #allocation9 [shape = 's32[1]{0}', space=sflag, size = 0x4, scoped, tag = 'scoped memory for tpu_custom_call.1']
    #allocation10 [shape = 'u8[512]{0}', space=vmem, size = 0x400, scoped, tag = 'input window, operand 6, single buffered']
    #allocation11 [shape = 'u8[16384]{0}', space=vmem, size = 0x4000, scoped, tag = 'input window, operand 7, single buffered']
    #allocation12 [shape = 's32[1]{0}', space=sflag, size = 0x4, scoped, tag = 'scoped memory for tpu_custom_call.1']
    #allocation13 [shape = 'u8[1024]{0}', space=vmem, size = 0x400, scoped, tag = 'output window, operand 0, single buffered']
    %16 = vsyncpa [#allocation3], 0
    %17 = vsyncpa [#allocation6], 0
    %18 = vsyncpa [#allocation9], 0
    %19 = vsyncpa [#allocation12], 0
    %20 = vsyncpa [#allocation4], 0
    // Predicated region
    $region2: #{tpu_custom_call.1} parent=1 // pred_check
      _
    $region3: #{tpu_custom_call.1} parent=1 // pred_check_branch
      %22 = sbr.rel (0) target = $region5
    $region4: #{tpu_custom_call.1} parent=1 // pred_region
      _
    $region5: #{tpu_custom_call.1} parent=1 // pred_fallthru
      _
    // Predicated region
    $region6: #{tpu_custom_call.1} parent=1 // pred_check
      _
    $region7: #{tpu_custom_call.1} parent=1 // pred_check_branch
      %24 = sbr.rel (0) target = $region9
    $region8: #{tpu_custom_call.1} parent=1 // pred_region
      %s26 = ssub.s32 16, 16
      %27 = vsyncadd [#allocation3], %s26
      %s29 = sshll.u32 [#allocation2], 4
      %s30 = int_to_ptr.vmem [resolvable:$true] %s29
      %32 = dma.hbm_to_vmem [thread:$0]  %s1, 16, %s30, [#allocation3]
    $region9: #{tpu_custom_call.1} parent=1 // pred_fallthru
      _
    // Predicated region
    $region10: #{tpu_custom_call.1} parent=1 // pred_check
      _
    $region11: #{tpu_custom_call.1} parent=1 // pred_check_branch
      %34 = sbr.rel (0) target = $region13
    $region12: #{tpu_custom_call.1} parent=1 // pred_region
      %s36 = ssub.s32 16, 16
      %37 = vsyncadd [#allocation6], %s36
      %s39 = sshll.u32 [#allocation5], 4
      %s40 = int_to_ptr.vmem [resolvable:$true] %s39
      %42 = dma.hbm_to_vmem [thread:$0]  %s2, 16, %s40, [#allocation6]
    $region13: #{tpu_custom_call.1} parent=1 // pred_fallthru
      _
    // Predicated region
    $region14: #{tpu_custom_call.1} parent=1 // pred_check
      _
    $region15: #{tpu_custom_call.1} parent=1 // pred_check_branch
      %44 = sbr.rel (0) target = $region17
    $region16: #{tpu_custom_call.1} parent=1 // pred_region
      %s46 = ssub.s32 512, 512
      %47 = vsyncadd [#allocation6], %s46
      %s48 = sshll.u32 [#allocation7], 4
      %s49 = int_to_ptr.vmem [resolvable:$true] %s48
      %54 = dma.hbm_to_vmem [thread:$0]  %s3, 512, %s49, [#allocation6], 128, 128, 8
    $region17: #{tpu_custom_call.1} parent=1 // pred_fallthru
      _
    // Predicated region
    $region18: #{tpu_custom_call.1} parent=1 // pred_check
      _
    $region19: #{tpu_custom_call.1} parent=1 // pred_check_branch
      %56 = sbr.rel (0) target = $region21
    $region20: #{tpu_custom_call.1} parent=1 // pred_region
      %s58 = ssub.s32 16, 16
      %59 = vsyncadd [#allocation9], %s58
      %s61 = sshll.u32 [#allocation8], 4
      %s62 = int_to_ptr.vmem [resolvable:$true] %s61
      %64 = dma.hbm_to_vmem [thread:$0]  %s4, 16, %s62, [#allocation9]
    $region21: #{tpu_custom_call.1} parent=1 // pred_fallthru
      _
    // Predicated region
    $region22: #{tpu_custom_call.1} parent=1 // pred_check
      _
    $region23: #{tpu_custom_call.1} parent=1 // pred_check_branch
      %66 = sbr.rel (0) target = $region25
    $region24: #{tpu_custom_call.1} parent=1 // pred_region
      _
    $region25: #{tpu_custom_call.1} parent=1 // pred_fallthru
      _
    // Predicated region
    $region26: #{tpu_custom_call.1} parent=1 // pred_check
      _
    $region27: #{tpu_custom_call.1} parent=1 // pred_check_branch
      %68 = sbr.rel (0) target = $region29
    $region28: #{tpu_custom_call.1} parent=1 // pred_region
      %s70 = ssub.s32 16, 16
      %71 = vsyncadd [#allocation9], %s70
      %s73 = sshll.u32 [#allocation10], 4
      %s74 = int_to_ptr.vmem [resolvable:$true] %s73
      %76 = dma.hbm_to_vmem [thread:$0]  %s6, 16, %s74, [#allocation9]
    $region29: #{tpu_custom_call.1} parent=1 // pred_fallthru
      _
    // Predicated region
    $region30: #{tpu_custom_call.1} parent=1 // pred_check
      _
    $region31: #{tpu_custom_call.1} parent=1 // pred_check_branch
      %78 = sbr.rel (0) target = $region33
    $region32: #{tpu_custom_call.1} parent=1 // pred_region
      %s80 = ssub.s32 512, 512
      %81 = vsyncadd [#allocation12], %s80
      %s82 = sshll.u32 [#allocation11], 4
      %s83 = int_to_ptr.vmem [resolvable:$true] %s82
      %88 = dma.hbm_to_vmem [thread:$0]  %s7, 512, %s83, [#allocation12], 128, 128, 8
    $region33: #{tpu_custom_call.1} parent=1 // pred_fallthru
      _
    // Predicated region
    $region34: #{tpu_custom_call.1} parent=1 // pred_check
      _
    $region35: #{tpu_custom_call.1} parent=1 // pred_check_branch
      %90 = sbr.rel (0) target = $region37
    $region36: #{tpu_custom_call.1} parent=1 // pred_region
      _
    $region37: #{tpu_custom_call.1} parent=1 // pred_fallthru
      _
    // Predicated region
    $region38: #{tpu_custom_call.1} parent=1 // pred_check
      _
    $region39: #{tpu_custom_call.1} parent=1 // pred_check_branch
      %92 = sbr.rel (0) target = $region41
    $region40: #{tpu_custom_call.1} parent=1 // pred_region
      _
    $region41: #{tpu_custom_call.1} parent=1 // pred_fallthru
      _
    // Predicated region
    $region42: #{tpu_custom_call.1} parent=1 // pred_check
      _
    $region43: #{tpu_custom_call.1} parent=1 // pred_check_branch
      %94 = sbr.rel (0) target = $region45
    $region44: #{tpu_custom_call.1} parent=1 // pred_region
      _
    $region45: #{tpu_custom_call.1} parent=1 // pred_fallthru
      _
    // Predicated region
    $region46: #{tpu_custom_call.1} parent=1 // pred_check
      _
    $region47: #{tpu_custom_call.1} parent=1 // pred_check_branch
      %96 = sbr.rel (0) target = $region49
    $region48: #{tpu_custom_call.1} parent=1 // pred_region
      %97 = dma.done [#allocation3], 16
    $region49: #{tpu_custom_call.1} parent=1 // pred_fallthru
      _
    // Predicated region
    $region50: #{tpu_custom_call.1} parent=1 // pred_check
      _
    $region51: #{tpu_custom_call.1} parent=1 // pred_check_branch
      %99 = sbr.rel (0) target = $region53
    $region52: #{tpu_custom_call.1} parent=1 // pred_region
      %100 = dma.done [#allocation6], 16
    $region53: #{tpu_custom_call.1} parent=1 // pred_fallthru
      _
    // Predicated region
    $region54: #{tpu_custom_call.1} parent=1 // pred_check
      _
    $region55: #{tpu_custom_call.1} parent=1 // pred_check_branch
      %102 = sbr.rel (0) target = $region57
    $region56: #{tpu_custom_call.1} parent=1 // pred_region
      %103 = dma.done [#allocation6], 512
    $region57: #{tpu_custom_call.1} parent=1 // pred_fallthru
      _
    // Predicated region
    $region58: #{tpu_custom_call.1} parent=1 // pred_check
      _
    $region59: #{tpu_custom_call.1} parent=1 // pred_check_branch
      %105 = sbr.rel (0) target = $region61
    $region60: #{tpu_custom_call.1} parent=1 // pred_region
      %106 = dma.done [#allocation9], 16
    $region61: #{tpu_custom_call.1} parent=1 // pred_fallthru
      _
    // Predicated region
    $region62: #{tpu_custom_call.1} parent=1 // pred_check
      _
    $region63: #{tpu_custom_call.1} parent=1 // pred_check_branch
      %108 = sbr.rel (0) target = $region65
    $region64: #{tpu_custom_call.1} parent=1 // pred_region
      %109 = dma.done [#allocation9], 16
    $region65: #{tpu_custom_call.1} parent=1 // pred_fallthru
      _
    // Predicated region
    $region66: #{tpu_custom_call.1} parent=1 // pred_check
      _
    $region67: #{tpu_custom_call.1} parent=1 // pred_check_branch
      %111 = sbr.rel (0) target = $region69
    $region68: #{tpu_custom_call.1} parent=1 // pred_region
      %112 = dma.done [#allocation12], 512
    $region69: #{tpu_custom_call.1} parent=1 // pred_fallthru
      _
    %v113 = vld [vmem:[#allocation2] sm:$0x1]
    %v114 = vld [vmem:[#allocation5] sm:$0x1]
    %v115 = vld [vmem:[#allocation7] sm:$0xff]
    %v116 = vld [vmem:[#allocation7 + $0x8] sm:$0xff]
    %v117 = vld [vmem:[#allocation7 + $0x10] sm:$0xff]
    %v118 = vld [vmem:[#allocation7 + $0x18] sm:$0xff]
    %v119 = vld [vmem:[#allocation8] sm:$0x1]
    %v120 = vld [vmem:[%s5] sm:$0xff]
    %v121 = vld [vmem:[%s5 + $0x8] sm:$0xff]
    %v122 = vld [vmem:[%s5 + $0x10] sm:$0xff]
    %v123 = vld [vmem:[%s5 + $0x18] sm:$0xff]
    %v124 = vld [vmem:[%s5 + $0x20] sm:$0xff]
    %v125 = vld [vmem:[%s5 + $0x28] sm:$0xff]
    %v126 = vld [vmem:[%s5 + $0x30] sm:$0xff]
    %v127 = vld [vmem:[%s5 + $0x38] sm:$0xff]
    %v128 = vld [vmem:[#allocation10] sm:$0x1]
    %v129 = vld [vmem:[#allocation11] sm:$0xff]
    %v130 = vld [vmem:[#allocation11 + $0x8] sm:$0xff]
    %v131 = vld [vmem:[#allocation11 + $0x10] sm:$0xff]
    %v132 = vld [vmem:[#allocation11 + $0x18] sm:$0xff]
    %v133 = vld [vmem:[%s8] sm:$0x1]
    %v134 = vld [vmem:[%s9] sm:$0xff]
    %v135 = vld [vmem:[%s9 + $0x8] sm:$0xff]
    %v136 = vld [vmem:[%s9 + $0x10] sm:$0xff]
    %v137 = vld [vmem:[%s9 + $0x18] sm:$0xff]
    %v138 = vld [vmem:[%s10] sm:$0x1]
    %v139 = vld [vmem:[%s0] sm:$0xff]
    %v140 = vlaneseq
    %v141 = vshrl.u32 %v140, 7
    %v142 = vsub.s32 0, %v141
    %v143 = vrot.slane %v139, %v142
    %145 = vbcast.lane.b32.xlu0 %v143, 256
    %v146 = vpop.permute.xlu0 %145
    %v147 = vlaneseq
    %v148 = vshrl.u32 %v147, 7
    %v149 = vsub.s32 1, %v148
    %v150 = vrot.slane %v139, %v149
    %152 = vbcast.lane.b32.xlu0 %v150, 256
    %v153 = vpop.permute.xlu0 %152
    %v154 = vlaneseq
    %v155 = vshrl.u32 %v154, 7
    %v156 = vsub.s32 2, %v155
    %v157 = vrot.slane %v139, %v156
    %159 = vbcast.lane.b32.xlu0 %v157, 256
    %v160 = vpop.permute.xlu0 %159
    %v161 = vlaneseq
    %v162 = vshrl.u32 %v161, 7
    %v163 = vsub.s32 3, %v162
    %v164 = vrot.slane %v139, %v163
    %166 = vbcast.lane.b32.xlu0 %v164, 256
    %v167 = vpop.permute.xlu0 %166
    %v168 = vlaneseq
    %v169 = vshrl.u32 %v168, 7
    %v170 = vsub.s32 4, %v169
    %v171 = vrot.slane %v139, %v170
    %173 = vbcast.lane.b32.xlu0 %v171, 256
    %v174 = vpop.permute.xlu0 %173
    %v175 = vlaneseq
    %v176 = vshrl.u32 %v175, 7
    %v177 = vsub.s32 5, %v176
    %v178 = vrot.slane %v139, %v177
    %180 = vbcast.lane.b32.xlu0 %v178, 256
    %v181 = vpop.permute.xlu0 %180
    %v182 = vlaneseq
    %v183 = vshrl.u32 %v182, 7
    %v184 = vsub.s32 6, %v183
    %v185 = vrot.slane %v139, %v184
    %187 = vbcast.lane.b32.xlu0 %v185, 256
    %v188 = vpop.permute.xlu0 %187
    %v189 = vlaneseq
    %v190 = vshrl.u32 %v189, 7
    %v191 = vsub.s32 7, %v190
    %v192 = vrot.slane %v139, %v191
    %194 = vbcast.lane.b32.xlu0 %v192, 256
    %v195 = vpop.permute.xlu0 %194
    %v197 = vlaneseq
    %v198 = vshrl.u32 %v197, 7
    %v199 = vsub.s32 0, %v198
    %v200 = vrot.slane %v113, %v199
    %v202 = vmul.f32 %v146, %v200
    %v203 = vmul.f32 %v153, %v200
    %v204 = vmul.f32 %v160, %v200
    %v205 = vmul.f32 %v167, %v200
    %v206 = vmul.f32 %v174, %v200
    %v207 = vmul.f32 %v181, %v200
    %v208 = vmul.f32 %v188, %v200
    %v209 = vmul.f32 %v195, %v200
    %v211 = vlaneseq
    %v212 = vshrl.u32 %v211, 7
    %v213 = vsub.s32 0, %v212
    %v214 = vrot.slane %v114, %v213
    %v216 = vadd.f32 %v202, %v214
    %v217 = vadd.f32 %v203, %v214
    %v218 = vadd.f32 %v204, %v214
    %v219 = vadd.f32 %v205, %v214
    %v220 = vadd.f32 %v206, %v214
    %v221 = vadd.f32 %v207, %v214
    %v222 = vadd.f32 %v208, %v214
    %v223 = vadd.f32 %v209, %v214
    %v225 = vlaneseq
    %v226 = vshrl.u32 %v225, 7
    %v227 = vsub.s32 0, %v226
    %v228 = vrot.slane %v119, %v227
    %vm230 = vcmask 261120
    %v232 = vsel %vm230, 0.0, 0
    %234 = vmatprep.subr.mxu0 0.0
    %235 = vmatpush1.msra.mxu0 %v115
    %236 = vmatprep.subr.mxu0 0.0
    %237 = vmatpush1.msra.mxu0 %v116
    %238 = vmatprep.subr.mxu0 0.0
    %239 = vmatpush1.msra.mxu0 %v117
    %240 = vmatprep.subr.mxu0 0.0
    %241 = vmatpush1.msra.mxu0 %v118
    %242 = vmatprep.subr.mxu0 0.0
    %243 = vmatpush1.msra.mxu0 0.0
    %244 = vmatprep.subr.mxu0 0.0
    %245 = vmatpush1.msra.mxu0 0.0
    %246 = vmatprep.subr.mxu0 0.0
    %247 = vmatpush1.msra.mxu0 0.0
    %248 = vmatprep.subr.mxu0 0.0
    %249 = vmatpush1.msra.mxu0 0.0
    %250 = vmatprep.subr.mxu0 0.0
    %251 = vmatpush1.msra.mxu0 0.0
    %252 = vmatprep.subr.mxu0 0.0
    %253 = vmatpush1.msra.mxu0 0.0
    %254 = vmatprep.subr.mxu0 0.0
    %255 = vmatpush1.msra.mxu0 0.0
    %256 = vmatprep.subr.mxu0 0.0
    %257 = vmatpush1.msra.mxu0 0.0
    %258 = vmatprep.subr.mxu0 0.0
    %259 = vmatpush1.msra.mxu0 0.0
    %260 = vmatprep.subr.mxu0 0.0
    %261 = vmatpush1.msra.mxu0 0.0
    %262 = vmatprep.subr.mxu0 0.0
    %263 = vmatpush1.msra.mxu0 0.0
    %264 = vmatprep.subr.mxu0 0.0
    %265 = vmatpush1.msra.mxu0 0.0
    %266 = vmatprep.subr.mxu0 0.0
    %267 = vmatpush1.msra.mxu0 0.0
    %268 = vmatprep.subr.mxu0 0.0
    %269 = vmatpush1.msra.mxu0 0.0
    %270 = vmatprep.subr.mxu0 0.0
    %271 = vmatpush1.msra.mxu0 0.0
    %272 = vmatprep.subr.mxu0 0.0
    %273 = vmatpush1.msra.mxu0 0.0
    %274 = vmatprep.subr.mxu0 0.0
    %275 = vmatpush1.msra.mxu0 0.0
    %276 = vmatprep.subr.mxu0 0.0
    %277 = vmatpush1.msra.mxu0 0.0
    %278 = vmatprep.subr.mxu0 0.0
    %279 = vmatpush1.msra.mxu0 0.0
    %280 = vmatprep.subr.mxu0 0.0
    %281 = vmatpush1.msra.mxu0 0.0
    %282 = vmatprep.subr.mxu0 0.0
    %283 = vmatpush1.msra.mxu0 0.0
    %284 = vmatprep.subr.mxu0 0.0
    %285 = vmatpush1.msra.mxu0 0.0
    %286 = vmatprep.subr.mxu0 0.0
    %287 = vmatpush1.msra.mxu0 0.0
    %288 = vmatprep.subr.mxu0 0.0
    %289 = vmatpush1.msra.mxu0 0.0
    %290 = vmatprep.subr.mxu0 0.0
    %291 = vmatpush1.msra.mxu0 0.0
    %292 = vmatprep.subr.mxu0 0.0
    %293 = vmatpush1.msra.mxu0 0.0
    %294 = vmatprep.subr.mxu0 0.0
    %295 = vmatpush1.msra.mxu0 0.0
    %296 = vmatprep.subr.mxu0 0.0
    %297 = vmatpush1.msra.mxu0 0.0
    %298 = vmatprep.mubr.f32.mxu0 0.0
    %299 = vmatmul.mubr.f32.gmra.mrb[0].mxu0 %v232
    %v300 = vpop.f32.mrb[0].mxu0
    %v301 = vadd.f32 %v228, %v300
    %v302 = vpop.f32.mrb[0].mxu0
    %303 = vdwg.mxu0
    %v304 = vadd.f32 %v216, %v301
    %v305 = vxor.u32 %v304, 2147483648
    %v306 = vmul.f32 %v305, 1.442695
    %v307 = vpow.pop %v306
    %v308 = vadd.f32 %v307, 1.0
    %v309 = vrcp.pop %v308
    %v310 = vmul.f32 1.0, %v309
    %312 = vrot.lane.b32.xlu0 %v301, 64
    %v313 = vpop.permute.xlu0 %312
    %v315 = vmul.f32 %v310, %v313
    %317 = vrot.lane.b32.xlu0 %v315, 64
    %v318 = vpop.permute.xlu0 %317
    %v320 = vadd.f32 %v216, %v318
    %v321 = vtanh.pop %v320
    %v322 = vsub.f32 1.0, %v310
    %324 = vrot.lane.b32.xlu0 %v321, 96
    %v325 = vpop.permute.xlu0 %324
    %v327 = vmul.f32 %v322, %v325
    %v328 = vmul.f32 %v310, 0.0
    %v329 = vadd.f32 %v327, %v328
    %331 = vrot.lane.b32.xlu0 %v329, 96
    %v332 = vpop.permute.xlu0 %331
    %v334 = vsel %vm230, %v332, 0.0
    %v336 = vlaneseq
    %v337 = vshrl.u32 %v336, 7
    %v338 = vsub.s32 0, %v337
    %v339 = vrot.slane %v128, %v338
    %vm341 = vcmask 523264
    %v343 = vsel %vm341, %v334, 0
    %345 = vmatprep.subr.mxu0 0.0
    %346 = vmatpush1.msra.mxu0 %v120
    %347 = vmatprep.subr.mxu0 0.0
    %348 = vmatpush1.msra.mxu0 %v121
    %349 = vmatprep.subr.mxu0 0.0
    %350 = vmatpush1.msra.mxu0 %v122
    %351 = vmatprep.subr.mxu0 0.0
    %352 = vmatpush1.msra.mxu0 %v123
    %353 = vmatprep.subr.mxu0 0.0
    %354 = vmatpush1.msra.mxu0 %v124
    %355 = vmatprep.subr.mxu0 0.0
    %356 = vmatpush1.msra.mxu0 %v125
    %357 = vmatprep.subr.mxu0 0.0
    %358 = vmatpush1.msra.mxu0 %v126
    %359 = vmatprep.subr.mxu0 0.0
    %360 = vmatpush1.msra.mxu0 %v127
    %361 = vmatprep.subr.mxu0 0.0
    %362 = vmatpush1.msra.mxu0 0.0
    %363 = vmatprep.subr.mxu0 0.0
    %364 = vmatpush1.msra.mxu0 0.0
    %365 = vmatprep.subr.mxu0 0.0
    %366 = vmatpush1.msra.mxu0 0.0
    %367 = vmatprep.subr.mxu0 0.0
    %368 = vmatpush1.msra.mxu0 0.0
    %369 = vmatprep.subr.mxu0 0.0
    %370 = vmatpush1.msra.mxu0 0.0
    %371 = vmatprep.subr.mxu0 0.0
    %372 = vmatpush1.msra.mxu0 0.0
    %373 = vmatprep.subr.mxu0 0.0
    %374 = vmatpush1.msra.mxu0 0.0
    %375 = vmatprep.subr.mxu0 0.0
    %376 = vmatpush1.msra.mxu0 0.0
    %377 = vmatprep.subr.mxu0 0.0
    %378 = vmatpush1.msra.mxu0 0.0
    %379 = vmatprep.subr.mxu0 0.0
    %380 = vmatpush1.msra.mxu0 0.0
    %381 = vmatprep.subr.mxu0 0.0
    %382 = vmatpush1.msra.mxu0 0.0
    %383 = vmatprep.subr.mxu0 0.0
    %384 = vmatpush1.msra.mxu0 0.0
    %385 = vmatprep.subr.mxu0 0.0
    %386 = vmatpush1.msra.mxu0 0.0
    %387 = vmatprep.subr.mxu0 0.0
    %388 = vmatpush1.msra.mxu0 0.0
    %389 = vmatprep.subr.mxu0 0.0
    %390 = vmatpush1.msra.mxu0 0.0
    %391 = vmatprep.subr.mxu0 0.0
    %392 = vmatpush1.msra.mxu0 0.0
    %393 = vmatprep.subr.mxu0 0.0
    %394 = vmatpush1.msra.mxu0 0.0
    %395 = vmatprep.subr.mxu0 0.0
    %396 = vmatpush1.msra.mxu0 0.0
    %397 = vmatprep.subr.mxu0 0.0
    %398 = vmatpush1.msra.mxu0 0.0
    %399 = vmatprep.subr.mxu0 0.0
    %400 = vmatpush1.msra.mxu0 0.0
    %401 = vmatprep.subr.mxu0 0.0
    %402 = vmatpush1.msra.mxu0 0.0
    %403 = vmatprep.subr.mxu0 0.0
    %404 = vmatpush1.msra.mxu0 0.0
    %405 = vmatprep.subr.mxu0 0.0
    %406 = vmatpush1.msra.mxu0 0.0
    %407 = vmatprep.subr.mxu0 0.0
    %408 = vmatpush1.msra.mxu0 0.0
    %409 = vmatprep.mubr.f32.mxu0 0.0
    %410 = vmatmul.mubr.f32.gmra.mrb[0].mxu0 %v343
    %v411 = vpop.f32.mrb[0].mxu0
    %v412 = vadd.f32 %v339, %v411
    %v413 = vpop.f32.mrb[0].mxu0
    %414 = vdwg.mxu0
    %v415 = vxor.u32 %v412, 2147483648
    %v416 = vmul.f32 %v415, 1.442695
    %v417 = vpow.pop %v416
    %v418 = vadd.f32 %v417, 1.0
    %v419 = vrcp.pop %v418
    %v420 = vmul.f32 1.0, %v419
    %422 = vrot.lane.b32.xlu0 %v412, 32
    %v423 = vpop.permute.xlu0 %422
    %v425 = vmul.f32 %v420, %v423
    %427 = vrot.lane.b32.xlu0 %v425, 64
    %v428 = vpop.permute.xlu0 %427
    %v430 = vadd.f32 %v412, %v428
    %v431 = vtanh.pop %v430
    %v432 = vsub.f32 1.0, %v420
    %434 = vrot.lane.b32.xlu0 %v431, 96
    %v435 = vpop.permute.xlu0 %434
    %v437 = vmul.f32 %v432, %v435
    %v438 = vmul.f32 %v420, 0.0
    %v439 = vadd.f32 %v437, %v438
    %v440 = vsel %vm230, %v332, 0
    %442 = vmatprep.subr.mxu0 0.0
    %443 = vmatpush1.msra.mxu0 %v115
    %444 = vmatprep.subr.mxu0 0.0
    %445 = vmatpush1.msra.mxu0 %v116
    %446 = vmatprep.subr.mxu0 0.0
    %447 = vmatpush1.msra.mxu0 %v117
    %448 = vmatprep.subr.mxu0 0.0
    %449 = vmatpush1.msra.mxu0 %v118
    %450 = vmatprep.subr.mxu0 0.0
    %451 = vmatpush1.msra.mxu0 0.0
    %452 = vmatprep.subr.mxu0 0.0
    %453 = vmatpush1.msra.mxu0 0.0
    %454 = vmatprep.subr.mxu0 0.0
    %455 = vmatpush1.msra.mxu0 0.0
    %456 = vmatprep.subr.mxu0 0.0
    %457 = vmatpush1.msra.mxu0 0.0
    %458 = vmatprep.subr.mxu0 0.0
    %459 = vmatpush1.msra.mxu0 0.0
    %460 = vmatprep.subr.mxu0 0.0
    %461 = vmatpush1.msra.mxu0 0.0
    %462 = vmatprep.subr.mxu0 0.0
    %463 = vmatpush1.msra.mxu0 0.0
    %464 = vmatprep.subr.mxu0 0.0
    %465 = vmatpush1.msra.mxu0 0.0
    %466 = vmatprep.subr.mxu0 0.0
    %467 = vmatpush1.msra.mxu0 0.0
    %468 = vmatprep.subr.mxu0 0.0
    %469 = vmatpush1.msra.mxu0 0.0
    %470 = vmatprep.subr.mxu0 0.0
    %471 = vmatpush1.msra.mxu0 0.0
    %472 = vmatprep.subr.mxu0 0.0
    %473 = vmatpush1.msra.mxu0 0.0
    %474 = vmatprep.subr.mxu0 0.0
    %475 = vmatpush1.msra.mxu0 0.0
    %476 = vmatprep.subr.mxu0 0.0
    %477 = vmatpush1.msra.mxu0 0.0
    %478 = vmatprep.subr.mxu0 0.0
    %479 = vmatpush1.msra.mxu0 0.0
    %480 = vmatprep.subr.mxu0 0.0
    %481 = vmatpush1.msra.mxu0 0.0
    %482 = vmatprep.subr.mxu0 0.0
    %483 = vmatpush1.msra.mxu0 0.0
    %484 = vmatprep.subr.mxu0 0.0
    %485 = vmatpush1.msra.mxu0 0.0
    %486 = vmatprep.subr.mxu0 0.0
    %487 = vmatpush1.msra.mxu0 0.0
    %488 = vmatprep.subr.mxu0 0.0
    %489 = vmatpush1.msra.mxu0 0.0
    %490 = vmatprep.subr.mxu0 0.0
    %491 = vmatpush1.msra.mxu0 0.0
    %492 = vmatprep.subr.mxu0 0.0
    %493 = vmatpush1.msra.mxu0 0.0
    %494 = vmatprep.subr.mxu0 0.0
    %495 = vmatpush1.msra.mxu0 0.0
    %496 = vmatprep.subr.mxu0 0.0
    %497 = vmatpush1.msra.mxu0 0.0
    %498 = vmatprep.subr.mxu0 0.0
    %499 = vmatpush1.msra.mxu0 0.0
    %500 = vmatprep.subr.mxu0 0.0
    %501 = vmatpush1.msra.mxu0 0.0
    %502 = vmatprep.subr.mxu0 0.0
    %503 = vmatpush1.msra.mxu0 0.0
    %504 = vmatprep.subr.mxu0 0.0
    %505 = vmatpush1.msra.mxu0 0.0
    %506 = vmatprep.mubr.f32.mxu0 0.0
    %507 = vmatmul.mubr.f32.gmra.mrb[0].mxu0 %v440
    %v508 = vpop.f32.mrb[0].mxu0
    %v509 = vadd.f32 %v228, %v508
    %v510 = vpop.f32.mrb[0].mxu0
    %511 = vdwg.mxu0
    %v512 = vadd.f32 %v217, %v509
    %v513 = vxor.u32 %v512, 2147483648
    %v514 = vmul.f32 %v513, 1.442695
    %v515 = vpow.pop %v514
    %v516 = vadd.f32 %v515, 1.0
    %v517 = vrcp.pop %v516
    %v518 = vmul.f32 1.0, %v517
    %520 = vrot.lane.b32.xlu0 %v509, 64
    %v521 = vpop.permute.xlu0 %520
    %v523 = vmul.f32 %v518, %v521
    %525 = vrot.lane.b32.xlu0 %v523, 64
    %v526 = vpop.permute.xlu0 %525
    %v528 = vadd.f32 %v217, %v526
    %v529 = vtanh.pop %v528
    %v530 = vsub.f32 1.0, %v518
    %532 = vrot.lane.b32.xlu0 %v529, 96
    %v533 = vpop.permute.xlu0 %532
    %v535 = vmul.f32 %v530, %v533
    %v536 = vmul.f32 %v518, %v329
    %v537 = vadd.f32 %v535, %v536
    %539 = vrot.lane.b32.xlu0 %v537, 96
    %v540 = vpop.permute.xlu0 %539
    %v542 = vsel %vm230, %v540, %v439
    %v544 = vsel %vm341, %v542, 0
    %546 = vmatprep.subr.mxu0 0.0
    %547 = vmatpush1.msra.mxu0 %v120
    %548 = vmatprep.subr.mxu0 0.0
    %549 = vmatpush1.msra.mxu0 %v121
    %550 = vmatprep.subr.mxu0 0.0
    %551 = vmatpush1.msra.mxu0 %v122
    %552 = vmatprep.subr.mxu0 0.0
    %553 = vmatpush1.msra.mxu0 %v123
    %554 = vmatprep.subr.mxu0 0.0
    %555 = vmatpush1.msra.mxu0 %v124
    %556 = vmatprep.subr.mxu0 0.0
    %557 = vmatpush1.msra.mxu0 %v125
    %558 = vmatprep.subr.mxu0 0.0
    %559 = vmatpush1.msra.mxu0 %v126
    %560 = vmatprep.subr.mxu0 0.0
    %561 = vmatpush1.msra.mxu0 %v127
    %562 = vmatprep.subr.mxu0 0.0
    %563 = vmatpush1.msra.mxu0 0.0
    %564 = vmatprep.subr.mxu0 0.0
    %565 = vmatpush1.msra.mxu0 0.0
    %566 = vmatprep.subr.mxu0 0.0
    %567 = vmatpush1.msra.mxu0 0.0
    %568 = vmatprep.subr.mxu0 0.0
    %569 = vmatpush1.msra.mxu0 0.0
    %570 = vmatprep.subr.mxu0 0.0
    %571 = vmatpush1.msra.mxu0 0.0
    %572 = vmatprep.subr.mxu0 0.0
    %573 = vmatpush1.msra.mxu0 0.0
    %574 = vmatprep.subr.mxu0 0.0
    %575 = vmatpush1.msra.mxu0 0.0
    %576 = vmatprep.subr.mxu0 0.0
    %577 = vmatpush1.msra.mxu0 0.0
    %578 = vmatprep.subr.mxu0 0.0
    %579 = vmatpush1.msra.mxu0 0.0
    %580 = vmatprep.subr.mxu0 0.0
    %581 = vmatpush1.msra.mxu0 0.0
    %582 = vmatprep.subr.mxu0 0.0
    %583 = vmatpush1.msra.mxu0 0.0
    %584 = vmatprep.subr.mxu0 0.0
    %585 = vmatpush1.msra.mxu0 0.0
    %586 = vmatprep.subr.mxu0 0.0
    %587 = vmatpush1.msra.mxu0 0.0
    %588 = vmatprep.subr.mxu0 0.0
    %589 = vmatpush1.msra.mxu0 0.0
    %590 = vmatprep.subr.mxu0 0.0
    %591 = vmatpush1.msra.mxu0 0.0
    %592 = vmatprep.subr.mxu0 0.0
    %593 = vmatpush1.msra.mxu0 0.0
    %594 = vmatprep.subr.mxu0 0.0
    %595 = vmatpush1.msra.mxu0 0.0
    %596 = vmatprep.subr.mxu0 0.0
    %597 = vmatpush1.msra.mxu0 0.0
    %598 = vmatprep.subr.mxu0 0.0
    %599 = vmatpush1.msra.mxu0 0.0
    %600 = vmatprep.subr.mxu0 0.0
    %601 = vmatpush1.msra.mxu0 0.0
    %602 = vmatprep.subr.mxu0 0.0
    %603 = vmatpush1.msra.mxu0 0.0
    %604 = vmatprep.subr.mxu0 0.0
    %605 = vmatpush1.msra.mxu0 0.0
    %606 = vmatprep.subr.mxu0 0.0
    %607 = vmatpush1.msra.mxu0 0.0
    %608 = vmatprep.subr.mxu0 0.0
    %609 = vmatpush1.msra.mxu0 0.0
    %610 = vmatprep.mubr.f32.mxu0 0.0
    %611 = vmatmul.mubr.f32.gmra.mrb[0].mxu0 %v544
    %v612 = vpop.f32.mrb[0].mxu0
    %v613 = vadd.f32 %v339, %v612
    %v614 = vpop.f32.mrb[0].mxu0
    %615 = vdwg.mxu0
    %v616 = vxor.u32 %v613, 2147483648
    %v617 = vmul.f32 %v616, 1.442695
    %v618 = vpow.pop %v617
    %v619 = vadd.f32 %v618, 1.0
    %v620 = vrcp.pop %v619
    %v621 = vmul.f32 1.0, %v620
    %623 = vrot.lane.b32.xlu0 %v613, 32
    %v624 = vpop.permute.xlu0 %623
    %v626 = vmul.f32 %v621, %v624
    %628 = vrot.lane.b32.xlu0 %v626, 64
    %v629 = vpop.permute.xlu0 %628
    %v631 = vadd.f32 %v613, %v629
    %v632 = vtanh.pop %v631
    %v633 = vsub.f32 1.0, %v621
    %635 = vrot.lane.b32.xlu0 %v632, 96
    %v636 = vpop.permute.xlu0 %635
    %v638 = vmul.f32 %v633, %v636
    %v639 = vmul.f32 %v621, %v439
    %v640 = vadd.f32 %v638, %v639
    %v641 = vsel %vm230, %v540, 0
    %643 = vmatprep.subr.mxu0 0.0
    %644 = vmatpush1.msra.mxu0 %v115
    %645 = vmatprep.subr.mxu0 0.0
    %646 = vmatpush1.msra.mxu0 %v116
    %647 = vmatprep.subr.mxu0 0.0
    %648 = vmatpush1.msra.mxu0 %v117
    %649 = vmatprep.subr.mxu0 0.0
    %650 = vmatpush1.msra.mxu0 %v118
    %651 = vmatprep.subr.mxu0 0.0
    %652 = vmatpush1.msra.mxu0 0.0
    %653 = vmatprep.subr.mxu0 0.0
    %654 = vmatpush1.msra.mxu0 0.0
    %655 = vmatprep.subr.mxu0 0.0
    %656 = vmatpush1.msra.mxu0 0.0
    %657 = vmatprep.subr.mxu0 0.0
    %658 = vmatpush1.msra.mxu0 0.0
    %659 = vmatprep.subr.mxu0 0.0
    %660 = vmatpush1.msra.mxu0 0.0
    %661 = vmatprep.subr.mxu0 0.0
    %662 = vmatpush1.msra.mxu0 0.0
    %663 = vmatprep.subr.mxu0 0.0
    %664 = vmatpush1.msra.mxu0 0.0
    %665 = vmatprep.subr.mxu0 0.0
    %666 = vmatpush1.msra.mxu0 0.0
    %667 = vmatprep.subr.mxu0 0.0
    %668 = vmatpush1.msra.mxu0 0.0
    %669 = vmatprep.subr.mxu0 0.0
    %670 = vmatpush1.msra.mxu0 0.0
    %671 = vmatprep.subr.mxu0 0.0
    %672 = vmatpush1.msra.mxu0 0.0
    %673 = vmatprep.subr.mxu0 0.0
    %674 = vmatpush1.msra.mxu0 0.0
    %675 = vmatprep.subr.mxu0 0.0
    %676 = vmatpush1.msra.mxu0 0.0
    %677 = vmatprep.subr.mxu0 0.0
    %678 = vmatpush1.msra.mxu0 0.0
    %679 = vmatprep.subr.mxu0 0.0
    %680 = vmatpush1.msra.mxu0 0.0
    %681 = vmatprep.subr.mxu0 0.0
    %682 = vmatpush1.msra.mxu0 0.0
    %683 = vmatprep.subr.mxu0 0.0
    %684 = vmatpush1.msra.mxu0 0.0
    %685 = vmatprep.subr.mxu0 0.0
    %686 = vmatpush1.msra.mxu0 0.0
    %687 = vmatprep.subr.mxu0 0.0
    %688 = vmatpush1.msra.mxu0 0.0
    %689 = vmatprep.subr.mxu0 0.0
    %690 = vmatpush1.msra.mxu0 0.0
    %691 = vmatprep.subr.mxu0 0.0
    %692 = vmatpush1.msra.mxu0 0.0
    %693 = vmatprep.subr.mxu0 0.0
    %694 = vmatpush1.msra.mxu0 0.0
    %695 = vmatprep.subr.mxu0 0.0
    %696 = vmatpush1.msra.mxu0 0.0
    %697 = vmatprep.subr.mxu0 0.0
    %698 = vmatpush1.msra.mxu0 0.0
    %699 = vmatprep.subr.mxu0 0.0
    %700 = vmatpush1.msra.mxu0 0.0
    %701 = vmatprep.subr.mxu0 0.0
    %702 = vmatpush1.msra.mxu0 0.0
    %703 = vmatprep.subr.mxu0 0.0
    %704 = vmatpush1.msra.mxu0 0.0
    %705 = vmatprep.subr.mxu0 0.0
    %706 = vmatpush1.msra.mxu0 0.0
    %707 = vmatprep.mubr.f32.mxu0 0.0
    %708 = vmatmul.mubr.f32.gmra.mrb[0].mxu0 %v641
    %v709 = vpop.f32.mrb[0].mxu0
    %v710 = vadd.f32 %v228, %v709
    %v711 = vpop.f32.mrb[0].mxu0
    %712 = vdwg.mxu0
    %v713 = vadd.f32 %v218, %v710
    %v714 = vxor.u32 %v713, 2147483648
    %v715 = vmul.f32 %v714, 1.442695
    %v716 = vpow.pop %v715
    %v717 = vadd.f32 %v716, 1.0
    %v718 = vrcp.pop %v717
    %v719 = vmul.f32 1.0, %v718
    %721 = vrot.lane.b32.xlu0 %v710, 64
    %v722 = vpop.permute.xlu0 %721
    %v724 = vmul.f32 %v719, %v722
    %726 = vrot.lane.b32.xlu0 %v724, 64
    %v727 = vpop.permute.xlu0 %726
    %v729 = vadd.f32 %v218, %v727
    %v730 = vtanh.pop %v729
    %v731 = vsub.f32 1.0, %v719
    %733 = vrot.lane.b32.xlu0 %v730, 96
    %v734 = vpop.permute.xlu0 %733
    %v736 = vmul.f32 %v731, %v734
    %v737 = vmul.f32 %v719, %v537
    %v738 = vadd.f32 %v736, %v737
    %740 = vrot.lane.b32.xlu0 %v738, 96
    %v741 = vpop.permute.xlu0 %740
    %v743 = vsel %vm230, %v741, %v640
    %v745 = vsel %vm341, %v743, 0
    %747 = vmatprep.subr.mxu0 0.0
    %748 = vmatpush1.msra.mxu0 %v120
    %749 = vmatprep.subr.mxu0 0.0
    %750 = vmatpush1.msra.mxu0 %v121
    %751 = vmatprep.subr.mxu0 0.0
    %752 = vmatpush1.msra.mxu0 %v122
    %753 = vmatprep.subr.mxu0 0.0
    %754 = vmatpush1.msra.mxu0 %v123
    %755 = vmatprep.subr.mxu0 0.0
    %756 = vmatpush1.msra.mxu0 %v124
    %757 = vmatprep.subr.mxu0 0.0
    %758 = vmatpush1.msra.mxu0 %v125
    %759 = vmatprep.subr.mxu0 0.0
    %760 = vmatpush1.msra.mxu0 %v126
    %761 = vmatprep.subr.mxu0 0.0
    %762 = vmatpush1.msra.mxu0 %v127
    %763 = vmatprep.subr.mxu0 0.0
    %764 = vmatpush1.msra.mxu0 0.0
    %765 = vmatprep.subr.mxu0 0.0
    %766 = vmatpush1.msra.mxu0 0.0
    %767 = vmatprep.subr.mxu0 0.0
    %768 = vmatpush1.msra.mxu0 0.0
    %769 = vmatprep.subr.mxu0 0.0
    %770 = vmatpush1.msra.mxu0 0.0
    %771 = vmatprep.subr.mxu0 0.0
    %772 = vmatpush1.msra.mxu0 0.0
    %773 = vmatprep.subr.mxu0 0.0
    %774 = vmatpush1.msra.mxu0 0.0
    %775 = vmatprep.subr.mxu0 0.0
    %776 = vmatpush1.msra.mxu0 0.0
    %777 = vmatprep.subr.mxu0 0.0
    %778 = vmatpush1.msra.mxu0 0.0
    %779 = vmatprep.subr.mxu0 0.0
    %780 = vmatpush1.msra.mxu0 0.0
    %781 = vmatprep.subr.mxu0 0.0
    %782 = vmatpush1.msra.mxu0 0.0
    %783 = vmatprep.subr.mxu0 0.0
    %784 = vmatpush1.msra.mxu0 0.0
    %785 = vmatprep.subr.mxu0 0.0
    %786 = vmatpush1.msra.mxu0 0.0
    %787 = vmatprep.subr.mxu0 0.0
    %788 = vmatpush1.msra.mxu0 0.0
    %789 = vmatprep.subr.mxu0 0.0
    %790 = vmatpush1.msra.mxu0 0.0
    %791 = vmatprep.subr.mxu0 0.0
    %792 = vmatpush1.msra.mxu0 0.0
    %793 = vmatprep.subr.mxu0 0.0
    %794 = vmatpush1.msra.mxu0 0.0
    %795 = vmatprep.subr.mxu0 0.0
    %796 = vmatpush1.msra.mxu0 0.0
    %797 = vmatprep.subr.mxu0 0.0
    %798 = vmatpush1.msra.mxu0 0.0
    %799 = vmatprep.subr.mxu0 0.0
    %800 = vmatpush1.msra.mxu0 0.0
    %801 = vmatprep.subr.mxu0 0.0
    %802 = vmatpush1.msra.mxu0 0.0
    %803 = vmatprep.subr.mxu0 0.0
    %804 = vmatpush1.msra.mxu0 0.0
    %805 = vmatprep.subr.mxu0 0.0
    %806 = vmatpush1.msra.mxu0 0.0
    %807 = vmatprep.subr.mxu0 0.0
    %808 = vmatpush1.msra.mxu0 0.0
    %809 = vmatprep.subr.mxu0 0.0
    %810 = vmatpush1.msra.mxu0 0.0
    %811 = vmatprep.mubr.f32.mxu0 0.0
    %812 = vmatmul.mubr.f32.gmra.mrb[0].mxu0 %v745
    %v813 = vpop.f32.mrb[0].mxu0
    %v814 = vadd.f32 %v339, %v813
    %v815 = vpop.f32.mrb[0].mxu0
    %816 = vdwg.mxu0
    %v817 = vxor.u32 %v814, 2147483648
    %v818 = vmul.f32 %v817, 1.442695
    %v819 = vpow.pop %v818
    %v820 = vadd.f32 %v819, 1.0
    %v821 = vrcp.pop %v820
    %v822 = vmul.f32 1.0, %v821
    %824 = vrot.lane.b32.xlu0 %v814, 32
    %v825 = vpop.permute.xlu0 %824
    %v827 = vmul.f32 %v822, %v825
    %829 = vrot.lane.b32.xlu0 %v827, 64
    %v830 = vpop.permute.xlu0 %829
    %v832 = vadd.f32 %v814, %v830
    %v833 = vtanh.pop %v832
    %v834 = vsub.f32 1.0, %v822
    %836 = vrot.lane.b32.xlu0 %v833, 96
    %v837 = vpop.permute.xlu0 %836
    %v839 = vmul.f32 %v834, %v837
    %v840 = vmul.f32 %v822, %v640
    %v841 = vadd.f32 %v839, %v840
    %v842 = vsel %vm230, %v741, 0
    %844 = vmatprep.subr.mxu0 0.0
    %845 = vmatpush1.msra.mxu0 %v115
    %846 = vmatprep.subr.mxu0 0.0
    %847 = vmatpush1.msra.mxu0 %v116
    %848 = vmatprep.subr.mxu0 0.0
    %849 = vmatpush1.msra.mxu0 %v117
    %850 = vmatprep.subr.mxu0 0.0
    %851 = vmatpush1.msra.mxu0 %v118
    %852 = vmatprep.subr.mxu0 0.0
    %853 = vmatpush1.msra.mxu0 0.0
    %854 = vmatprep.subr.mxu0 0.0
    %855 = vmatpush1.msra.mxu0 0.0
    %856 = vmatprep.subr.mxu0 0.0
    %857 = vmatpush1.msra.mxu0 0.0
    %858 = vmatprep.subr.mxu0 0.0
    %859 = vmatpush1.msra.mxu0 0.0
    %860 = vmatprep.subr.mxu0 0.0
    %861 = vmatpush1.msra.mxu0 0.0
    %862 = vmatprep.subr.mxu0 0.0
    %863 = vmatpush1.msra.mxu0 0.0
    %864 = vmatprep.subr.mxu0 0.0
    %865 = vmatpush1.msra.mxu0 0.0
    %866 = vmatprep.subr.mxu0 0.0
    %867 = vmatpush1.msra.mxu0 0.0
    %868 = vmatprep.subr.mxu0 0.0
    %869 = vmatpush1.msra.mxu0 0.0
    %870 = vmatprep.subr.mxu0 0.0
    %871 = vmatpush1.msra.mxu0 0.0
    %872 = vmatprep.subr.mxu0 0.0
    %873 = vmatpush1.msra.mxu0 0.0
    %874 = vmatprep.subr.mxu0 0.0
    %875 = vmatpush1.msra.mxu0 0.0
    %876 = vmatprep.subr.mxu0 0.0
    %877 = vmatpush1.msra.mxu0 0.0
    %878 = vmatprep.subr.mxu0 0.0
    %879 = vmatpush1.msra.mxu0 0.0
    %880 = vmatprep.subr.mxu0 0.0
    %881 = vmatpush1.msra.mxu0 0.0
    %882 = vmatprep.subr.mxu0 0.0
    %883 = vmatpush1.msra.mxu0 0.0
    %884 = vmatprep.subr.mxu0 0.0
    %885 = vmatpush1.msra.mxu0 0.0
    %886 = vmatprep.subr.mxu0 0.0
    %887 = vmatpush1.msra.mxu0 0.0
    %888 = vmatprep.subr.mxu0 0.0
    %889 = vmatpush1.msra.mxu0 0.0
    %890 = vmatprep.subr.mxu0 0.0
    %891 = vmatpush1.msra.mxu0 0.0
    %892 = vmatprep.subr.mxu0 0.0
    %893 = vmatpush1.msra.mxu0 0.0
    %894 = vmatprep.subr.mxu0 0.0
    %895 = vmatpush1.msra.mxu0 0.0
    %896 = vmatprep.subr.mxu0 0.0
    %897 = vmatpush1.msra.mxu0 0.0
    %898 = vmatprep.subr.mxu0 0.0
    %899 = vmatpush1.msra.mxu0 0.0
    %900 = vmatprep.subr.mxu0 0.0
    %901 = vmatpush1.msra.mxu0 0.0
    %902 = vmatprep.subr.mxu0 0.0
    %903 = vmatpush1.msra.mxu0 0.0
    %904 = vmatprep.subr.mxu0 0.0
    %905 = vmatpush1.msra.mxu0 0.0
    %906 = vmatprep.subr.mxu0 0.0
    %907 = vmatpush1.msra.mxu0 0.0
    %908 = vmatprep.mubr.f32.mxu0 0.0
    %909 = vmatmul.mubr.f32.gmra.mrb[0].mxu0 %v842
    %v910 = vpop.f32.mrb[0].mxu0
    %v911 = vadd.f32 %v228, %v910
    %v912 = vpop.f32.mrb[0].mxu0
    %913 = vdwg.mxu0
    %v914 = vadd.f32 %v219, %v911
    %v915 = vxor.u32 %v914, 2147483648
    %v916 = vmul.f32 %v915, 1.442695
    %v917 = vpow.pop %v916
    %v918 = vadd.f32 %v917, 1.0
    %v919 = vrcp.pop %v918
    %v920 = vmul.f32 1.0, %v919
    %922 = vrot.lane.b32.xlu0 %v911, 64
    %v923 = vpop.permute.xlu0 %922
    %v925 = vmul.f32 %v920, %v923
    %927 = vrot.lane.b32.xlu0 %v925, 64
    %v928 = vpop.permute.xlu0 %927
    %v930 = vadd.f32 %v219, %v928
    %v931 = vtanh.pop %v930
    %v932 = vsub.f32 1.0, %v920
    %934 = vrot.lane.b32.xlu0 %v931, 96
    %v935 = vpop.permute.xlu0 %934
    %v937 = vmul.f32 %v932, %v935
    %v938 = vmul.f32 %v920, %v738
    %v939 = vadd.f32 %v937, %v938
    %941 = vrot.lane.b32.xlu0 %v939, 96
    %v942 = vpop.permute.xlu0 %941
    %v944 = vsel %vm230, %v942, %v841
    %v946 = vsel %vm341, %v944, 0
    %948 = vmatprep.subr.mxu0 0.0
    %949 = vmatpush1.msra.mxu0 %v120
    %950 = vmatprep.subr.mxu0 0.0
    %951 = vmatpush1.msra.mxu0 %v121
    %952 = vmatprep.subr.mxu0 0.0
    %953 = vmatpush1.msra.mxu0 %v122
    %954 = vmatprep.subr.mxu0 0.0
    %955 = vmatpush1.msra.mxu0 %v123
    %956 = vmatprep.subr.mxu0 0.0
    %957 = vmatpush1.msra.mxu0 %v124
    %958 = vmatprep.subr.mxu0 0.0
    %959 = vmatpush1.msra.mxu0 %v125
    %960 = vmatprep.subr.mxu0 0.0
    %961 = vmatpush1.msra.mxu0 %v126
    %962 = vmatprep.subr.mxu0 0.0
    %963 = vmatpush1.msra.mxu0 %v127
    %964 = vmatprep.subr.mxu0 0.0
    %965 = vmatpush1.msra.mxu0 0.0
    %966 = vmatprep.subr.mxu0 0.0
    %967 = vmatpush1.msra.mxu0 0.0
    %968 = vmatprep.subr.mxu0 0.0
    %969 = vmatpush1.msra.mxu0 0.0
    %970 = vmatprep.subr.mxu0 0.0
    %971 = vmatpush1.msra.mxu0 0.0
    %972 = vmatprep.subr.mxu0 0.0
    %973 = vmatpush1.msra.mxu0 0.0
    %974 = vmatprep.subr.mxu0 0.0
    %975 = vmatpush1.msra.mxu0 0.0
    %976 = vmatprep.subr.mxu0 0.0
    %977 = vmatpush1.msra.mxu0 0.0
    %978 = vmatprep.subr.mxu0 0.0
    %979 = vmatpush1.msra.mxu0 0.0
    %980 = vmatprep.subr.mxu0 0.0
    %981 = vmatpush1.msra.mxu0 0.0
    %982 = vmatprep.subr.mxu0 0.0
    %983 = vmatpush1.msra.mxu0 0.0
    %984 = vmatprep.subr.mxu0 0.0
    %985 = vmatpush1.msra.mxu0 0.0
    %986 = vmatprep.subr.mxu0 0.0
    %987 = vmatpush1.msra.mxu0 0.0
    %988 = vmatprep.subr.mxu0 0.0
    %989 = vmatpush1.msra.mxu0 0.0
    %990 = vmatprep.subr.mxu0 0.0
    %991 = vmatpush1.msra.mxu0 0.0
    %992 = vmatprep.subr.mxu0 0.0
    %993 = vmatpush1.msra.mxu0 0.0
    %994 = vmatprep.subr.mxu0 0.0
    %995 = vmatpush1.msra.mxu0 0.0
    %996 = vmatprep.subr.mxu0 0.0
    %997 = vmatpush1.msra.mxu0 0.0
    %998 = vmatprep.subr.mxu0 0.0
    %999 = vmatpush1.msra.mxu0 0.0
    %1000 = vmatprep.subr.mxu0 0.0
    %1001 = vmatpush1.msra.mxu0 0.0
    %1002 = vmatprep.subr.mxu0 0.0
    %1003 = vmatpush1.msra.mxu0 0.0
    %1004 = vmatprep.subr.mxu0 0.0
    %1005 = vmatpush1.msra.mxu0 0.0
    %1006 = vmatprep.subr.mxu0 0.0
    %1007 = vmatpush1.msra.mxu0 0.0
    %1008 = vmatprep.subr.mxu0 0.0
    %1009 = vmatpush1.msra.mxu0 0.0
    %1010 = vmatprep.subr.mxu0 0.0
    %1011 = vmatpush1.msra.mxu0 0.0
    %1012 = vmatprep.mubr.f32.mxu0 0.0
    %1013 = vmatmul.mubr.f32.gmra.mrb[0].mxu0 %v946
    %v1014 = vpop.f32.mrb[0].mxu0
    %v1015 = vadd.f32 %v339, %v1014
    %v1016 = vpop.f32.mrb[0].mxu0
    %1017 = vdwg.mxu0
    %v1018 = vxor.u32 %v1015, 2147483648
    %v1019 = vmul.f32 %v1018, 1.442695
    %v1020 = vpow.pop %v1019
    %v1021 = vadd.f32 %v1020, 1.0
    %v1022 = vrcp.pop %v1021
    %v1023 = vmul.f32 1.0, %v1022
    %1025 = vrot.lane.b32.xlu0 %v1015, 32
    %v1026 = vpop.permute.xlu0 %1025
    %v1028 = vmul.f32 %v1023, %v1026
    %1030 = vrot.lane.b32.xlu0 %v1028, 64
    %v1031 = vpop.permute.xlu0 %1030
    %v1033 = vadd.f32 %v1015, %v1031
    %v1034 = vtanh.pop %v1033
    %v1035 = vsub.f32 1.0, %v1023
    %1037 = vrot.lane.b32.xlu0 %v1034, 96
    %v1038 = vpop.permute.xlu0 %1037
    %v1040 = vmul.f32 %v1035, %v1038
    %v1041 = vmul.f32 %v1023, %v841
    %v1042 = vadd.f32 %v1040, %v1041
    %v1043 = vsel %vm230, %v942, 0
    %1045 = vmatprep.subr.mxu0 0.0
    %1046 = vmatpush1.msra.mxu0 %v115
    %1047 = vmatprep.subr.mxu0 0.0
    %1048 = vmatpush1.msra.mxu0 %v116
    %1049 = vmatprep.subr.mxu0 0.0
    %1050 = vmatpush1.msra.mxu0 %v117
    %1051 = vmatprep.subr.mxu0 0.0
    %1052 = vmatpush1.msra.mxu0 %v118
    %1053 = vmatprep.subr.mxu0 0.0
    %1054 = vmatpush1.msra.mxu0 0.0
    %1055 = vmatprep.subr.mxu0 0.0
    %1056 = vmatpush1.msra.mxu0 0.0
    %1057 = vmatprep.subr.mxu0 0.0
    %1058 = vmatpush1.msra.mxu0 0.0
    %1059 = vmatprep.subr.mxu0 0.0
    %1060 = vmatpush1.msra.mxu0 0.0
    %1061 = vmatprep.subr.mxu0 0.0
    %1062 = vmatpush1.msra.mxu0 0.0
    %1063 = vmatprep.subr.mxu0 0.0
    %1064 = vmatpush1.msra.mxu0 0.0
    %1065 = vmatprep.subr.mxu0 0.0
    %1066 = vmatpush1.msra.mxu0 0.0
    %1067 = vmatprep.subr.mxu0 0.0
    %1068 = vmatpush1.msra.mxu0 0.0
    %1069 = vmatprep.subr.mxu0 0.0
    %1070 = vmatpush1.msra.mxu0 0.0
    %1071 = vmatprep.subr.mxu0 0.0
    %1072 = vmatpush1.msra.mxu0 0.0
    %1073 = vmatprep.subr.mxu0 0.0
    %1074 = vmatpush1.msra.mxu0 0.0
    %1075 = vmatprep.subr.mxu0 0.0
    %1076 = vmatpush1.msra.mxu0 0.0
    %1077 = vmatprep.subr.mxu0 0.0
    %1078 = vmatpush1.msra.mxu0 0.0
    %1079 = vmatprep.subr.mxu0 0.0
    %1080 = vmatpush1.msra.mxu0 0.0
    %1081 = vmatprep.subr.mxu0 0.0
    %1082 = vmatpush1.msra.mxu0 0.0
    %1083 = vmatprep.subr.mxu0 0.0
    %1084 = vmatpush1.msra.mxu0 0.0
    %1085 = vmatprep.subr.mxu0 0.0
    %1086 = vmatpush1.msra.mxu0 0.0
    %1087 = vmatprep.subr.mxu0 0.0
    %1088 = vmatpush1.msra.mxu0 0.0
    %1089 = vmatprep.subr.mxu0 0.0
    %1090 = vmatpush1.msra.mxu0 0.0
    %1091 = vmatprep.subr.mxu0 0.0
    %1092 = vmatpush1.msra.mxu0 0.0
    %1093 = vmatprep.subr.mxu0 0.0
    %1094 = vmatpush1.msra.mxu0 0.0
    %1095 = vmatprep.subr.mxu0 0.0
    %1096 = vmatpush1.msra.mxu0 0.0
    %1097 = vmatprep.subr.mxu0 0.0
    %1098 = vmatpush1.msra.mxu0 0.0
    %1099 = vmatprep.subr.mxu0 0.0
    %1100 = vmatpush1.msra.mxu0 0.0
    %1101 = vmatprep.subr.mxu0 0.0
    %1102 = vmatpush1.msra.mxu0 0.0
    %1103 = vmatprep.subr.mxu0 0.0
    %1104 = vmatpush1.msra.mxu0 0.0
    %1105 = vmatprep.subr.mxu0 0.0
    %1106 = vmatpush1.msra.mxu0 0.0
    %1107 = vmatprep.subr.mxu0 0.0
    %1108 = vmatpush1.msra.mxu0 0.0
    %1109 = vmatprep.mubr.f32.mxu0 0.0
    %1110 = vmatmul.mubr.f32.gmra.mrb[0].mxu0 %v1043
    %v1111 = vpop.f32.mrb[0].mxu0
    %v1112 = vadd.f32 %v228, %v1111
    %v1113 = vpop.f32.mrb[0].mxu0
    %1114 = vdwg.mxu0
    %v1115 = vadd.f32 %v220, %v1112
    %v1116 = vxor.u32 %v1115, 2147483648
    %v1117 = vmul.f32 %v1116, 1.442695
    %v1118 = vpow.pop %v1117
    %v1119 = vadd.f32 %v1118, 1.0
    %v1120 = vrcp.pop %v1119
    %v1121 = vmul.f32 1.0, %v1120
    %1123 = vrot.lane.b32.xlu0 %v1112, 64
    %v1124 = vpop.permute.xlu0 %1123
    %v1126 = vmul.f32 %v1121, %v1124
    %1128 = vrot.lane.b32.xlu0 %v1126, 64
    %v1129 = vpop.permute.xlu0 %1128
    %v1131 = vadd.f32 %v220, %v1129
    %v1132 = vtanh.pop %v1131
    %v1133 = vsub.f32 1.0, %v1121
    %1135 = vrot.lane.b32.xlu0 %v1132, 96
    %v1136 = vpop.permute.xlu0 %1135
    %v1138 = vmul.f32 %v1133, %v1136
    %v1139 = vmul.f32 %v1121, %v939
    %v1140 = vadd.f32 %v1138, %v1139
    %1142 = vrot.lane.b32.xlu0 %v1140, 96
    %v1143 = vpop.permute.xlu0 %1142
    %v1145 = vsel %vm230, %v1143, %v1042
    %v1147 = vsel %vm341, %v1145, 0
    %1149 = vmatprep.subr.mxu0 0.0
    %1150 = vmatpush1.msra.mxu0 %v120
    %1151 = vmatprep.subr.mxu0 0.0
    %1152 = vmatpush1.msra.mxu0 %v121
    %1153 = vmatprep.subr.mxu0 0.0
    %1154 = vmatpush1.msra.mxu0 %v122
    %1155 = vmatprep.subr.mxu0 0.0
    %1156 = vmatpush1.msra.mxu0 %v123
    %1157 = vmatprep.subr.mxu0 0.0
    %1158 = vmatpush1.msra.mxu0 %v124
    %1159 = vmatprep.subr.mxu0 0.0
    %1160 = vmatpush1.msra.mxu0 %v125
    %1161 = vmatprep.subr.mxu0 0.0
    %1162 = vmatpush1.msra.mxu0 %v126
    %1163 = vmatprep.subr.mxu0 0.0
    %1164 = vmatpush1.msra.mxu0 %v127
    %1165 = vmatprep.subr.mxu0 0.0
    %1166 = vmatpush1.msra.mxu0 0.0
    %1167 = vmatprep.subr.mxu0 0.0
    %1168 = vmatpush1.msra.mxu0 0.0
    %1169 = vmatprep.subr.mxu0 0.0
    %1170 = vmatpush1.msra.mxu0 0.0
    %1171 = vmatprep.subr.mxu0 0.0
    %1172 = vmatpush1.msra.mxu0 0.0
    %1173 = vmatprep.subr.mxu0 0.0
    %1174 = vmatpush1.msra.mxu0 0.0
    %1175 = vmatprep.subr.mxu0 0.0
    %1176 = vmatpush1.msra.mxu0 0.0
    %1177 = vmatprep.subr.mxu0 0.0
    %1178 = vmatpush1.msra.mxu0 0.0
    %1179 = vmatprep.subr.mxu0 0.0
    %1180 = vmatpush1.msra.mxu0 0.0
    %1181 = vmatprep.subr.mxu0 0.0
    %1182 = vmatpush1.msra.mxu0 0.0
    %1183 = vmatprep.subr.mxu0 0.0
    %1184 = vmatpush1.msra.mxu0 0.0
    %1185 = vmatprep.subr.mxu0 0.0
    %1186 = vmatpush1.msra.mxu0 0.0
    %1187 = vmatprep.subr.mxu0 0.0
    %1188 = vmatpush1.msra.mxu0 0.0
    %1189 = vmatprep.subr.mxu0 0.0
    %1190 = vmatpush1.msra.mxu0 0.0
    %1191 = vmatprep.subr.mxu0 0.0
    %1192 = vmatpush1.msra.mxu0 0.0
    %1193 = vmatprep.subr.mxu0 0.0
    %1194 = vmatpush1.msra.mxu0 0.0
    %1195 = vmatprep.subr.mxu0 0.0
    %1196 = vmatpush1.msra.mxu0 0.0
    %1197 = vmatprep.subr.mxu0 0.0
    %1198 = vmatpush1.msra.mxu0 0.0
    %1199 = vmatprep.subr.mxu0 0.0
    %1200 = vmatpush1.msra.mxu0 0.0
    %1201 = vmatprep.subr.mxu0 0.0
    %1202 = vmatpush1.msra.mxu0 0.0
    %1203 = vmatprep.subr.mxu0 0.0
    %1204 = vmatpush1.msra.mxu0 0.0
    %1205 = vmatprep.subr.mxu0 0.0
    %1206 = vmatpush1.msra.mxu0 0.0
    %1207 = vmatprep.subr.mxu0 0.0
    %1208 = vmatpush1.msra.mxu0 0.0
    %1209 = vmatprep.subr.mxu0 0.0
    %1210 = vmatpush1.msra.mxu0 0.0
    %1211 = vmatprep.subr.mxu0 0.0
    %1212 = vmatpush1.msra.mxu0 0.0
    %1213 = vmatprep.mubr.f32.mxu0 0.0
    %1214 = vmatmul.mubr.f32.gmra.mrb[0].mxu0 %v1147
    %v1215 = vpop.f32.mrb[0].mxu0
    %v1216 = vadd.f32 %v339, %v1215
    %v1217 = vpop.f32.mrb[0].mxu0
    %1218 = vdwg.mxu0
    %v1219 = vxor.u32 %v1216, 2147483648
    %v1220 = vmul.f32 %v1219, 1.442695
    %v1221 = vpow.pop %v1220
    %v1222 = vadd.f32 %v1221, 1.0
    %v1223 = vrcp.pop %v1222
    %v1224 = vmul.f32 1.0, %v1223
    %1226 = vrot.lane.b32.xlu0 %v1216, 32
    %v1227 = vpop.permute.xlu0 %1226
    %v1229 = vmul.f32 %v1224, %v1227
    %1231 = vrot.lane.b32.xlu0 %v1229, 64
    %v1232 = vpop.permute.xlu0 %1231
    %v1234 = vadd.f32 %v1216, %v1232
    %v1235 = vtanh.pop %v1234
    %v1236 = vsub.f32 1.0, %v1224
    %1238 = vrot.lane.b32.xlu0 %v1235, 96
    %v1239 = vpop.permute.xlu0 %1238
    %v1241 = vmul.f32 %v1236, %v1239
    %v1242 = vmul.f32 %v1224, %v1042
    %v1243 = vadd.f32 %v1241, %v1242
    %v1244 = vsel %vm230, %v1143, 0
    %1246 = vmatprep.subr.mxu0 0.0
    %1247 = vmatpush1.msra.mxu0 %v115
    %1248 = vmatprep.subr.mxu0 0.0
    %1249 = vmatpush1.msra.mxu0 %v116
    %1250 = vmatprep.subr.mxu0 0.0
    %1251 = vmatpush1.msra.mxu0 %v117
    %1252 = vmatprep.subr.mxu0 0.0
    %1253 = vmatpush1.msra.mxu0 %v118
    %1254 = vmatprep.subr.mxu0 0.0
    %1255 = vmatpush1.msra.mxu0 0.0
    %1256 = vmatprep.subr.mxu0 0.0
    %1257 = vmatpush1.msra.mxu0 0.0
    %1258 = vmatprep.subr.mxu0 0.0
    %1259 = vmatpush1.msra.mxu0 0.0
    %1260 = vmatprep.subr.mxu0 0.0
    %1261 = vmatpush1.msra.mxu0 0.0
    %1262 = vmatprep.subr.mxu0 0.0
    %1263 = vmatpush1.msra.mxu0 0.0
    %1264 = vmatprep.subr.mxu0 0.0
    %1265 = vmatpush1.msra.mxu0 0.0
    %1266 = vmatprep.subr.mxu0 0.0
    %1267 = vmatpush1.msra.mxu0 0.0
    %1268 = vmatprep.subr.mxu0 0.0
    %1269 = vmatpush1.msra.mxu0 0.0
    %1270 = vmatprep.subr.mxu0 0.0
    %1271 = vmatpush1.msra.mxu0 0.0
    %1272 = vmatprep.subr.mxu0 0.0
    %1273 = vmatpush1.msra.mxu0 0.0
    %1274 = vmatprep.subr.mxu0 0.0
    %1275 = vmatpush1.msra.mxu0 0.0
    %1276 = vmatprep.subr.mxu0 0.0
    %1277 = vmatpush1.msra.mxu0 0.0
    %1278 = vmatprep.subr.mxu0 0.0
    %1279 = vmatpush1.msra.mxu0 0.0
    %1280 = vmatprep.subr.mxu0 0.0
    %1281 = vmatpush1.msra.mxu0 0.0
    %1282 = vmatprep.subr.mxu0 0.0
    %1283 = vmatpush1.msra.mxu0 0.0
    %1284 = vmatprep.subr.mxu0 0.0
    %1285 = vmatpush1.msra.mxu0 0.0
    %1286 = vmatprep.subr.mxu0 0.0
    %1287 = vmatpush1.msra.mxu0 0.0
    %1288 = vmatprep.subr.mxu0 0.0
    %1289 = vmatpush1.msra.mxu0 0.0
    %1290 = vmatprep.subr.mxu0 0.0
    %1291 = vmatpush1.msra.mxu0 0.0
    %1292 = vmatprep.subr.mxu0 0.0
    %1293 = vmatpush1.msra.mxu0 0.0
    %1294 = vmatprep.subr.mxu0 0.0
    %1295 = vmatpush1.msra.mxu0 0.0
    %1296 = vmatprep.subr.mxu0 0.0
    %1297 = vmatpush1.msra.mxu0 0.0
    %1298 = vmatprep.subr.mxu0 0.0
    %1299 = vmatpush1.msra.mxu0 0.0
    %1300 = vmatprep.subr.mxu0 0.0
    %1301 = vmatpush1.msra.mxu0 0.0
    %1302 = vmatprep.subr.mxu0 0.0
    %1303 = vmatpush1.msra.mxu0 0.0
    %1304 = vmatprep.subr.mxu0 0.0
    %1305 = vmatpush1.msra.mxu0 0.0
    %1306 = vmatprep.subr.mxu0 0.0
    %1307 = vmatpush1.msra.mxu0 0.0
    %1308 = vmatprep.subr.mxu0 0.0
    %1309 = vmatpush1.msra.mxu0 0.0
    %1310 = vmatprep.mubr.f32.mxu0 0.0
    %1311 = vmatmul.mubr.f32.gmra.mrb[0].mxu0 %v1244
    %v1312 = vpop.f32.mrb[0].mxu0
    %v1313 = vadd.f32 %v228, %v1312
    %v1314 = vpop.f32.mrb[0].mxu0
    %1315 = vdwg.mxu0
    %v1316 = vadd.f32 %v221, %v1313
    %v1317 = vxor.u32 %v1316, 2147483648
    %v1318 = vmul.f32 %v1317, 1.442695
    %v1319 = vpow.pop %v1318
    %v1320 = vadd.f32 %v1319, 1.0
    %v1321 = vrcp.pop %v1320
    %v1322 = vmul.f32 1.0, %v1321
    %1324 = vrot.lane.b32.xlu0 %v1313, 64
    %v1325 = vpop.permute.xlu0 %1324
    %v1327 = vmul.f32 %v1322, %v1325
    %1329 = vrot.lane.b32.xlu0 %v1327, 64
    %v1330 = vpop.permute.xlu0 %1329
    %v1332 = vadd.f32 %v221, %v1330
    %v1333 = vtanh.pop %v1332
    %v1334 = vsub.f32 1.0, %v1322
    %1336 = vrot.lane.b32.xlu0 %v1333, 96
    %v1337 = vpop.permute.xlu0 %1336
    %v1339 = vmul.f32 %v1334, %v1337
    %v1340 = vmul.f32 %v1322, %v1140
    %v1341 = vadd.f32 %v1339, %v1340
    %1343 = vrot.lane.b32.xlu0 %v1341, 96
    %v1344 = vpop.permute.xlu0 %1343
    %v1346 = vsel %vm230, %v1344, %v1243
    %v1348 = vsel %vm341, %v1346, 0
    %1350 = vmatprep.subr.mxu0 0.0
    %1351 = vmatpush1.msra.mxu0 %v120
    %1352 = vmatprep.subr.mxu0 0.0
    %1353 = vmatpush1.msra.mxu0 %v121
    %1354 = vmatprep.subr.mxu0 0.0
    %1355 = vmatpush1.msra.mxu0 %v122
    %1356 = vmatprep.subr.mxu0 0.0
    %1357 = vmatpush1.msra.mxu0 %v123
    %1358 = vmatprep.subr.mxu0 0.0
    %1359 = vmatpush1.msra.mxu0 %v124
    %1360 = vmatprep.subr.mxu0 0.0
    %1361 = vmatpush1.msra.mxu0 %v125
    %1362 = vmatprep.subr.mxu0 0.0
    %1363 = vmatpush1.msra.mxu0 %v126
    %1364 = vmatprep.subr.mxu0 0.0
    %1365 = vmatpush1.msra.mxu0 %v127
    %1366 = vmatprep.subr.mxu0 0.0
    %1367 = vmatpush1.msra.mxu0 0.0
    %1368 = vmatprep.subr.mxu0 0.0
    %1369 = vmatpush1.msra.mxu0 0.0
    %1370 = vmatprep.subr.mxu0 0.0
    %1371 = vmatpush1.msra.mxu0 0.0
    %1372 = vmatprep.subr.mxu0 0.0
    %1373 = vmatpush1.msra.mxu0 0.0
    %1374 = vmatprep.subr.mxu0 0.0
    %1375 = vmatpush1.msra.mxu0 0.0
    %1376 = vmatprep.subr.mxu0 0.0
    %1377 = vmatpush1.msra.mxu0 0.0
    %1378 = vmatprep.subr.mxu0 0.0
    %1379 = vmatpush1.msra.mxu0 0.0
    %1380 = vmatprep.subr.mxu0 0.0
    %1381 = vmatpush1.msra.mxu0 0.0
    %1382 = vmatprep.subr.mxu0 0.0
    %1383 = vmatpush1.msra.mxu0 0.0
    %1384 = vmatprep.subr.mxu0 0.0
    %1385 = vmatpush1.msra.mxu0 0.0
    %1386 = vmatprep.subr.mxu0 0.0
    %1387 = vmatpush1.msra.mxu0 0.0
    %1388 = vmatprep.subr.mxu0 0.0
    %1389 = vmatpush1.msra.mxu0 0.0
    %1390 = vmatprep.subr.mxu0 0.0
    %1391 = vmatpush1.msra.mxu0 0.0
    %1392 = vmatprep.subr.mxu0 0.0
    %1393 = vmatpush1.msra.mxu0 0.0
    %1394 = vmatprep.subr.mxu0 0.0
    %1395 = vmatpush1.msra.mxu0 0.0
    %1396 = vmatprep.subr.mxu0 0.0
    %1397 = vmatpush1.msra.mxu0 0.0
    %1398 = vmatprep.subr.mxu0 0.0
    %1399 = vmatpush1.msra.mxu0 0.0
    %1400 = vmatprep.subr.mxu0 0.0
    %1401 = vmatpush1.msra.mxu0 0.0
    %1402 = vmatprep.subr.mxu0 0.0
    %1403 = vmatpush1.msra.mxu0 0.0
    %1404 = vmatprep.subr.mxu0 0.0
    %1405 = vmatpush1.msra.mxu0 0.0
    %1406 = vmatprep.subr.mxu0 0.0
    %1407 = vmatpush1.msra.mxu0 0.0
    %1408 = vmatprep.subr.mxu0 0.0
    %1409 = vmatpush1.msra.mxu0 0.0
    %1410 = vmatprep.subr.mxu0 0.0
    %1411 = vmatpush1.msra.mxu0 0.0
    %1412 = vmatprep.subr.mxu0 0.0
    %1413 = vmatpush1.msra.mxu0 0.0
    %1414 = vmatprep.mubr.f32.mxu0 0.0
    %1415 = vmatmul.mubr.f32.gmra.mrb[0].mxu0 %v1348
    %v1416 = vpop.f32.mrb[0].mxu0
    %v1417 = vadd.f32 %v339, %v1416
    %v1418 = vpop.f32.mrb[0].mxu0
    %1419 = vdwg.mxu0
    %v1420 = vxor.u32 %v1417, 2147483648
    %v1421 = vmul.f32 %v1420, 1.442695
    %v1422 = vpow.pop %v1421
    %v1423 = vadd.f32 %v1422, 1.0
    %v1424 = vrcp.pop %v1423
    %v1425 = vmul.f32 1.0, %v1424
    %1427 = vrot.lane.b32.xlu0 %v1417, 32
    %v1428 = vpop.permute.xlu0 %1427
    %v1430 = vmul.f32 %v1425, %v1428
    %1432 = vrot.lane.b32.xlu0 %v1430, 64
    %v1433 = vpop.permute.xlu0 %1432
    %v1435 = vadd.f32 %v1417, %v1433
    %v1436 = vtanh.pop %v1435
    %v1437 = vsub.f32 1.0, %v1425
    %1439 = vrot.lane.b32.xlu0 %v1436, 96
    %v1440 = vpop.permute.xlu0 %1439
    %v1442 = vmul.f32 %v1437, %v1440
    %v1443 = vmul.f32 %v1425, %v1243
    %v1444 = vadd.f32 %v1442, %v1443
    %v1445 = vsel %vm230, %v1344, 0
    %1447 = vmatprep.subr.mxu0 0.0
    %1448 = vmatpush1.msra.mxu0 %v115
    %1449 = vmatprep.subr.mxu0 0.0
    %1450 = vmatpush1.msra.mxu0 %v116
    %1451 = vmatprep.subr.mxu0 0.0
    %1452 = vmatpush1.msra.mxu0 %v117
    %1453 = vmatprep.subr.mxu0 0.0
    %1454 = vmatpush1.msra.mxu0 %v118
    %1455 = vmatprep.subr.mxu0 0.0
    %1456 = vmatpush1.msra.mxu0 0.0
    %1457 = vmatprep.subr.mxu0 0.0
    %1458 = vmatpush1.msra.mxu0 0.0
    %1459 = vmatprep.subr.mxu0 0.0
    %1460 = vmatpush1.msra.mxu0 0.0
    %1461 = vmatprep.subr.mxu0 0.0
    %1462 = vmatpush1.msra.mxu0 0.0
    %1463 = vmatprep.subr.mxu0 0.0
    %1464 = vmatpush1.msra.mxu0 0.0
    %1465 = vmatprep.subr.mxu0 0.0
    %1466 = vmatpush1.msra.mxu0 0.0
    %1467 = vmatprep.subr.mxu0 0.0
    %1468 = vmatpush1.msra.mxu0 0.0
    %1469 = vmatprep.subr.mxu0 0.0
    %1470 = vmatpush1.msra.mxu0 0.0
    %1471 = vmatprep.subr.mxu0 0.0
    %1472 = vmatpush1.msra.mxu0 0.0
    %1473 = vmatprep.subr.mxu0 0.0
    %1474 = vmatpush1.msra.mxu0 0.0
    %1475 = vmatprep.subr.mxu0 0.0
    %1476 = vmatpush1.msra.mxu0 0.0
    %1477 = vmatprep.subr.mxu0 0.0
    %1478 = vmatpush1.msra.mxu0 0.0
    %1479 = vmatprep.subr.mxu0 0.0
    %1480 = vmatpush1.msra.mxu0 0.0
    %1481 = vmatprep.subr.mxu0 0.0
    %1482 = vmatpush1.msra.mxu0 0.0
    %1483 = vmatprep.subr.mxu0 0.0
    %1484 = vmatpush1.msra.mxu0 0.0
    %1485 = vmatprep.subr.mxu0 0.0
    %1486 = vmatpush1.msra.mxu0 0.0
    %1487 = vmatprep.subr.mxu0 0.0
    %1488 = vmatpush1.msra.mxu0 0.0
    %1489 = vmatprep.subr.mxu0 0.0
    %1490 = vmatpush1.msra.mxu0 0.0
    %1491 = vmatprep.subr.mxu0 0.0
    %1492 = vmatpush1.msra.mxu0 0.0
    %1493 = vmatprep.subr.mxu0 0.0
    %1494 = vmatpush1.msra.mxu0 0.0
    %1495 = vmatprep.subr.mxu0 0.0
    %1496 = vmatpush1.msra.mxu0 0.0
    %1497 = vmatprep.subr.mxu0 0.0
    %1498 = vmatpush1.msra.mxu0 0.0
    %1499 = vmatprep.subr.mxu0 0.0
    %1500 = vmatpush1.msra.mxu0 0.0
    %1501 = vmatprep.subr.mxu0 0.0
    %1502 = vmatpush1.msra.mxu0 0.0
    %1503 = vmatprep.subr.mxu0 0.0
    %1504 = vmatpush1.msra.mxu0 0.0
    %1505 = vmatprep.subr.mxu0 0.0
    %1506 = vmatpush1.msra.mxu0 0.0
    %1507 = vmatprep.subr.mxu0 0.0
    %1508 = vmatpush1.msra.mxu0 0.0
    %1509 = vmatprep.subr.mxu0 0.0
    %1510 = vmatpush1.msra.mxu0 0.0
    %1511 = vmatprep.mubr.f32.mxu0 0.0
    %1512 = vmatmul.mubr.f32.gmra.mrb[0].mxu0 %v1445
    %v1513 = vpop.f32.mrb[0].mxu0
    %v1514 = vadd.f32 %v228, %v1513
    %v1515 = vpop.f32.mrb[0].mxu0
    %1516 = vdwg.mxu0
    %v1517 = vadd.f32 %v222, %v1514
    %v1518 = vxor.u32 %v1517, 2147483648
    %v1519 = vmul.f32 %v1518, 1.442695
    %v1520 = vpow.pop %v1519
    %v1521 = vadd.f32 %v1520, 1.0
    %v1522 = vrcp.pop %v1521
    %v1523 = vmul.f32 1.0, %v1522
    %1525 = vrot.lane.b32.xlu0 %v1514, 64
    %v1526 = vpop.permute.xlu0 %1525
    %v1528 = vmul.f32 %v1523, %v1526
    %1530 = vrot.lane.b32.xlu0 %v1528, 64
    %v1531 = vpop.permute.xlu0 %1530
    %v1533 = vadd.f32 %v222, %v1531
    %v1534 = vtanh.pop %v1533
    %v1535 = vsub.f32 1.0, %v1523
    %1537 = vrot.lane.b32.xlu0 %v1534, 96
    %v1538 = vpop.permute.xlu0 %1537
    %v1540 = vmul.f32 %v1535, %v1538
    %v1541 = vmul.f32 %v1523, %v1341
    %v1542 = vadd.f32 %v1540, %v1541
    %1544 = vrot.lane.b32.xlu0 %v1542, 96
    %v1545 = vpop.permute.xlu0 %1544
    %v1547 = vsel %vm230, %v1545, %v1444
    %v1549 = vsel %vm341, %v1547, 0
    %1551 = vmatprep.subr.mxu0 0.0
    %1552 = vmatpush1.msra.mxu0 %v120
    %1553 = vmatprep.subr.mxu0 0.0
    %1554 = vmatpush1.msra.mxu0 %v121
    %1555 = vmatprep.subr.mxu0 0.0
    %1556 = vmatpush1.msra.mxu0 %v122
    %1557 = vmatprep.subr.mxu0 0.0
    %1558 = vmatpush1.msra.mxu0 %v123
    %1559 = vmatprep.subr.mxu0 0.0
    %1560 = vmatpush1.msra.mxu0 %v124
    %1561 = vmatprep.subr.mxu0 0.0
    %1562 = vmatpush1.msra.mxu0 %v125
    %1563 = vmatprep.subr.mxu0 0.0
    %1564 = vmatpush1.msra.mxu0 %v126
    %1565 = vmatprep.subr.mxu0 0.0
    %1566 = vmatpush1.msra.mxu0 %v127
    %1567 = vmatprep.subr.mxu0 0.0
    %1568 = vmatpush1.msra.mxu0 0.0
    %1569 = vmatprep.subr.mxu0 0.0
    %1570 = vmatpush1.msra.mxu0 0.0
    %1571 = vmatprep.subr.mxu0 0.0
    %1572 = vmatpush1.msra.mxu0 0.0
    %1573 = vmatprep.subr.mxu0 0.0
    %1574 = vmatpush1.msra.mxu0 0.0
    %1575 = vmatprep.subr.mxu0 0.0
    %1576 = vmatpush1.msra.mxu0 0.0
    %1577 = vmatprep.subr.mxu0 0.0
    %1578 = vmatpush1.msra.mxu0 0.0
    %1579 = vmatprep.subr.mxu0 0.0
    %1580 = vmatpush1.msra.mxu0 0.0
    %1581 = vmatprep.subr.mxu0 0.0
    %1582 = vmatpush1.msra.mxu0 0.0
    %1583 = vmatprep.subr.mxu0 0.0
    %1584 = vmatpush1.msra.mxu0 0.0
    %1585 = vmatprep.subr.mxu0 0.0
    %1586 = vmatpush1.msra.mxu0 0.0
    %1587 = vmatprep.subr.mxu0 0.0
    %1588 = vmatpush1.msra.mxu0 0.0
    %1589 = vmatprep.subr.mxu0 0.0
    %1590 = vmatpush1.msra.mxu0 0.0
    %1591 = vmatprep.subr.mxu0 0.0
    %1592 = vmatpush1.msra.mxu0 0.0
    %1593 = vmatprep.subr.mxu0 0.0
    %1594 = vmatpush1.msra.mxu0 0.0
    %1595 = vmatprep.subr.mxu0 0.0
    %1596 = vmatpush1.msra.mxu0 0.0
    %1597 = vmatprep.subr.mxu0 0.0
    %1598 = vmatpush1.msra.mxu0 0.0
    %1599 = vmatprep.subr.mxu0 0.0
    %1600 = vmatpush1.msra.mxu0 0.0
    %1601 = vmatprep.subr.mxu0 0.0
    %1602 = vmatpush1.msra.mxu0 0.0
    %1603 = vmatprep.subr.mxu0 0.0
    %1604 = vmatpush1.msra.mxu0 0.0
    %1605 = vmatprep.subr.mxu0 0.0
    %1606 = vmatpush1.msra.mxu0 0.0
    %1607 = vmatprep.subr.mxu0 0.0
    %1608 = vmatpush1.msra.mxu0 0.0
    %1609 = vmatprep.subr.mxu0 0.0
    %1610 = vmatpush1.msra.mxu0 0.0
    %1611 = vmatprep.subr.mxu0 0.0
    %1612 = vmatpush1.msra.mxu0 0.0
    %1613 = vmatprep.subr.mxu0 0.0
    %1614 = vmatpush1.msra.mxu0 0.0
    %1615 = vmatprep.mubr.f32.mxu0 0.0
    %1616 = vmatmul.mubr.f32.gmra.mrb[0].mxu0 %v1549
    %v1617 = vpop.f32.mrb[0].mxu0
    %v1618 = vadd.f32 %v339, %v1617
    %v1619 = vpop.f32.mrb[0].mxu0
    %1620 = vdwg.mxu0
    %v1621 = vxor.u32 %v1618, 2147483648
    %v1622 = vmul.f32 %v1621, 1.442695
    %v1623 = vpow.pop %v1622
    %v1624 = vadd.f32 %v1623, 1.0
    %v1625 = vrcp.pop %v1624
    %v1626 = vmul.f32 1.0, %v1625
    %1628 = vrot.lane.b32.xlu0 %v1618, 32
    %v1629 = vpop.permute.xlu0 %1628
    %v1631 = vmul.f32 %v1626, %v1629
    %1633 = vrot.lane.b32.xlu0 %v1631, 64
    %v1634 = vpop.permute.xlu0 %1633
    %v1636 = vadd.f32 %v1618, %v1634
    %v1637 = vtanh.pop %v1636
    %v1638 = vsub.f32 1.0, %v1626
    %1640 = vrot.lane.b32.xlu0 %v1637, 96
    %v1641 = vpop.permute.xlu0 %1640
    %v1643 = vmul.f32 %v1638, %v1641
    %v1644 = vmul.f32 %v1626, %v1444
    %v1645 = vadd.f32 %v1643, %v1644
    %v1646 = vsel %vm230, %v1545, 0
    %1648 = vmatprep.subr.mxu0 0.0
    %1649 = vmatpush1.msra.mxu0 %v115
    %1650 = vmatprep.subr.mxu0 0.0
    %1651 = vmatpush1.msra.mxu0 %v116
    %1652 = vmatprep.subr.mxu0 0.0
    %1653 = vmatpush1.msra.mxu0 %v117
    %1654 = vmatprep.subr.mxu0 0.0
    %1655 = vmatpush1.msra.mxu0 %v118
    %1656 = vmatprep.subr.mxu0 0.0
    %1657 = vmatpush1.msra.mxu0 0.0
    %1658 = vmatprep.subr.mxu0 0.0
    %1659 = vmatpush1.msra.mxu0 0.0
    %1660 = vmatprep.subr.mxu0 0.0
    %1661 = vmatpush1.msra.mxu0 0.0
    %1662 = vmatprep.subr.mxu0 0.0
    %1663 = vmatpush1.msra.mxu0 0.0
    %1664 = vmatprep.subr.mxu0 0.0
    %1665 = vmatpush1.msra.mxu0 0.0
    %1666 = vmatprep.subr.mxu0 0.0
    %1667 = vmatpush1.msra.mxu0 0.0
    %1668 = vmatprep.subr.mxu0 0.0
    %1669 = vmatpush1.msra.mxu0 0.0
    %1670 = vmatprep.subr.mxu0 0.0
    %1671 = vmatpush1.msra.mxu0 0.0
    %1672 = vmatprep.subr.mxu0 0.0
    %1673 = vmatpush1.msra.mxu0 0.0
    %1674 = vmatprep.subr.mxu0 0.0
    %1675 = vmatpush1.msra.mxu0 0.0
    %1676 = vmatprep.subr.mxu0 0.0
    %1677 = vmatpush1.msra.mxu0 0.0
    %1678 = vmatprep.subr.mxu0 0.0
    %1679 = vmatpush1.msra.mxu0 0.0
    %1680 = vmatprep.subr.mxu0 0.0
    %1681 = vmatpush1.msra.mxu0 0.0
    %1682 = vmatprep.subr.mxu0 0.0
    %1683 = vmatpush1.msra.mxu0 0.0
    %1684 = vmatprep.subr.mxu0 0.0
    %1685 = vmatpush1.msra.mxu0 0.0
    %1686 = vmatprep.subr.mxu0 0.0
    %1687 = vmatpush1.msra.mxu0 0.0
    %1688 = vmatprep.subr.mxu0 0.0
    %1689 = vmatpush1.msra.mxu0 0.0
    %1690 = vmatprep.subr.mxu0 0.0
    %1691 = vmatpush1.msra.mxu0 0.0
    %1692 = vmatprep.subr.mxu0 0.0
    %1693 = vmatpush1.msra.mxu0 0.0
    %1694 = vmatprep.subr.mxu0 0.0
    %1695 = vmatpush1.msra.mxu0 0.0
    %1696 = vmatprep.subr.mxu0 0.0
    %1697 = vmatpush1.msra.mxu0 0.0
    %1698 = vmatprep.subr.mxu0 0.0
    %1699 = vmatpush1.msra.mxu0 0.0
    %1700 = vmatprep.subr.mxu0 0.0
    %1701 = vmatpush1.msra.mxu0 0.0
    %1702 = vmatprep.subr.mxu0 0.0
    %1703 = vmatpush1.msra.mxu0 0.0
    %1704 = vmatprep.subr.mxu0 0.0
    %1705 = vmatpush1.msra.mxu0 0.0
    %1706 = vmatprep.subr.mxu0 0.0
    %1707 = vmatpush1.msra.mxu0 0.0
    %1708 = vmatprep.subr.mxu0 0.0
    %1709 = vmatpush1.msra.mxu0 0.0
    %1710 = vmatprep.subr.mxu0 0.0
    %1711 = vmatpush1.msra.mxu0 0.0
    %1712 = vmatprep.mubr.f32.mxu0 0.0
    %1713 = vmatmul.mubr.f32.gmra.mrb[0].mxu0 %v1646
    %v1714 = vpop.f32.mrb[0].mxu0
    %v1715 = vadd.f32 %v228, %v1714
    %v1716 = vpop.f32.mrb[0].mxu0
    %1717 = vdwg.mxu0
    %v1718 = vadd.f32 %v223, %v1715
    %v1719 = vxor.u32 %v1718, 2147483648
    %v1720 = vmul.f32 %v1719, 1.442695
    %v1721 = vpow.pop %v1720
    %v1722 = vadd.f32 %v1721, 1.0
    %v1723 = vrcp.pop %v1722
    %v1724 = vmul.f32 1.0, %v1723
    %1726 = vrot.lane.b32.xlu0 %v1715, 64
    %v1727 = vpop.permute.xlu0 %1726
    %v1729 = vmul.f32 %v1724, %v1727
    %1731 = vrot.lane.b32.xlu0 %v1729, 64
    %v1732 = vpop.permute.xlu0 %1731
    %v1734 = vadd.f32 %v223, %v1732
    %v1735 = vtanh.pop %v1734
    %v1736 = vsub.f32 1.0, %v1724
    %1738 = vrot.lane.b32.xlu0 %v1735, 96
    %v1739 = vpop.permute.xlu0 %1738
    %v1741 = vmul.f32 %v1736, %v1739
    %v1742 = vmul.f32 %v1724, %v1542
    %v1743 = vadd.f32 %v1741, %v1742
    %1745 = vrot.lane.b32.xlu0 %v1743, 96
    %v1746 = vpop.permute.xlu0 %1745
    %v1748 = vsel %vm230, %v1746, %v1645
    %v1750 = vsel %vm341, %v1748, 0
    %1752 = vmatprep.subr.mxu0 0.0
    %1753 = vmatpush1.msra.mxu0 %v120
    %1754 = vmatprep.subr.mxu0 0.0
    %1755 = vmatpush1.msra.mxu0 %v121
    %1756 = vmatprep.subr.mxu0 0.0
    %1757 = vmatpush1.msra.mxu0 %v122
    %1758 = vmatprep.subr.mxu0 0.0
    %1759 = vmatpush1.msra.mxu0 %v123
    %1760 = vmatprep.subr.mxu0 0.0
    %1761 = vmatpush1.msra.mxu0 %v124
    %1762 = vmatprep.subr.mxu0 0.0
    %1763 = vmatpush1.msra.mxu0 %v125
    %1764 = vmatprep.subr.mxu0 0.0
    %1765 = vmatpush1.msra.mxu0 %v126
    %1766 = vmatprep.subr.mxu0 0.0
    %1767 = vmatpush1.msra.mxu0 %v127
    %1768 = vmatprep.subr.mxu0 0.0
    %1769 = vmatpush1.msra.mxu0 0.0
    %1770 = vmatprep.subr.mxu0 0.0
    %1771 = vmatpush1.msra.mxu0 0.0
    %1772 = vmatprep.subr.mxu0 0.0
    %1773 = vmatpush1.msra.mxu0 0.0
    %1774 = vmatprep.subr.mxu0 0.0
    %1775 = vmatpush1.msra.mxu0 0.0
    %1776 = vmatprep.subr.mxu0 0.0
    %1777 = vmatpush1.msra.mxu0 0.0
    %1778 = vmatprep.subr.mxu0 0.0
    %1779 = vmatpush1.msra.mxu0 0.0
    %1780 = vmatprep.subr.mxu0 0.0
    %1781 = vmatpush1.msra.mxu0 0.0
    %1782 = vmatprep.subr.mxu0 0.0
    %1783 = vmatpush1.msra.mxu0 0.0
    %1784 = vmatprep.subr.mxu0 0.0
    %1785 = vmatpush1.msra.mxu0 0.0
    %1786 = vmatprep.subr.mxu0 0.0
    %1787 = vmatpush1.msra.mxu0 0.0
    %1788 = vmatprep.subr.mxu0 0.0
    %1789 = vmatpush1.msra.mxu0 0.0
    %1790 = vmatprep.subr.mxu0 0.0
    %1791 = vmatpush1.msra.mxu0 0.0
    %1792 = vmatprep.subr.mxu0 0.0
    %1793 = vmatpush1.msra.mxu0 0.0
    %1794 = vmatprep.subr.mxu0 0.0
    %1795 = vmatpush1.msra.mxu0 0.0
    %1796 = vmatprep.subr.mxu0 0.0
    %1797 = vmatpush1.msra.mxu0 0.0
    %1798 = vmatprep.subr.mxu0 0.0
    %1799 = vmatpush1.msra.mxu0 0.0
    %1800 = vmatprep.subr.mxu0 0.0
    %1801 = vmatpush1.msra.mxu0 0.0
    %1802 = vmatprep.subr.mxu0 0.0
    %1803 = vmatpush1.msra.mxu0 0.0
    %1804 = vmatprep.subr.mxu0 0.0
    %1805 = vmatpush1.msra.mxu0 0.0
    %1806 = vmatprep.subr.mxu0 0.0
    %1807 = vmatpush1.msra.mxu0 0.0
    %1808 = vmatprep.subr.mxu0 0.0
    %1809 = vmatpush1.msra.mxu0 0.0
    %1810 = vmatprep.subr.mxu0 0.0
    %1811 = vmatpush1.msra.mxu0 0.0
    %1812 = vmatprep.subr.mxu0 0.0
    %1813 = vmatpush1.msra.mxu0 0.0
    %1814 = vmatprep.subr.mxu0 0.0
    %1815 = vmatpush1.msra.mxu0 0.0
    %1816 = vmatprep.mubr.f32.mxu0 0.0
    %1817 = vmatmul.mubr.f32.gmra.mrb[0].mxu0 %v1750
    %v1818 = vpop.f32.mrb[0].mxu0
    %v1819 = vadd.f32 %v339, %v1818
    %v1820 = vpop.f32.mrb[0].mxu0
    %1821 = vdwg.mxu0
    %v1822 = vxor.u32 %v1819, 2147483648
    %v1823 = vmul.f32 %v1822, 1.442695
    %v1824 = vpow.pop %v1823
    %v1825 = vadd.f32 %v1824, 1.0
    %v1826 = vrcp.pop %v1825
    %v1827 = vmul.f32 1.0, %v1826
    %1829 = vrot.lane.b32.xlu0 %v1819, 32
    %v1830 = vpop.permute.xlu0 %1829
    %v1832 = vmul.f32 %v1827, %v1830
    %1834 = vrot.lane.b32.xlu0 %v1832, 64
    %v1835 = vpop.permute.xlu0 %1834
    %v1837 = vadd.f32 %v1819, %v1835
    %v1838 = vtanh.pop %v1837
    %v1839 = vsub.f32 1.0, %v1827
    %1841 = vrot.lane.b32.xlu0 %v1838, 96
    %v1842 = vpop.permute.xlu0 %1841
    %v1844 = vmul.f32 %v1839, %v1842
    %v1845 = vmul.f32 %v1827, %v1645
    %v1846 = vadd.f32 %v1844, %v1845
    %v1848 = vlaneseq
    %v1849 = vshrl.u32 %v1848, 7
    %v1850 = vsub.s32 0, %v1849
    %v1851 = vrot.slane %v133, %v1850
    %1854 = vrot.lane.b32.xlu0 %v1846, 96
    %v1855 = vpop.permute.xlu0 %1854
    %v1856 = vsel %vm230, %v1855, 0
    %1858 = vmatprep.subr.mxu0 0.0
    %1859 = vmatpush1.msra.mxu0 %v129
    %1860 = vmatprep.subr.mxu0 0.0
    %1861 = vmatpush1.msra.mxu0 %v130
    %1862 = vmatprep.subr.mxu0 0.0
    %1863 = vmatpush1.msra.mxu0 %v131
    %1864 = vmatprep.subr.mxu0 0.0
    %1865 = vmatpush1.msra.mxu0 %v132
    %1866 = vmatprep.subr.mxu0 0.0
    %1867 = vmatpush1.msra.mxu0 0.0
    %1868 = vmatprep.subr.mxu0 0.0
    %1869 = vmatpush1.msra.mxu0 0.0
    %1870 = vmatprep.subr.mxu0 0.0
    %1871 = vmatpush1.msra.mxu0 0.0
    %1872 = vmatprep.subr.mxu0 0.0
    %1873 = vmatpush1.msra.mxu0 0.0
    %1874 = vmatprep.subr.mxu0 0.0
    %1875 = vmatpush1.msra.mxu0 0.0
    %1876 = vmatprep.subr.mxu0 0.0
    %1877 = vmatpush1.msra.mxu0 0.0
    %1878 = vmatprep.subr.mxu0 0.0
    %1879 = vmatpush1.msra.mxu0 0.0
    %1880 = vmatprep.subr.mxu0 0.0
    %1881 = vmatpush1.msra.mxu0 0.0
    %1882 = vmatprep.subr.mxu0 0.0
    %1883 = vmatpush1.msra.mxu0 0.0
    %1884 = vmatprep.subr.mxu0 0.0
    %1885 = vmatpush1.msra.mxu0 0.0
    %1886 = vmatprep.subr.mxu0 0.0
    %1887 = vmatpush1.msra.mxu0 0.0
    %1888 = vmatprep.subr.mxu0 0.0
    %1889 = vmatpush1.msra.mxu0 0.0
    %1890 = vmatprep.subr.mxu0 0.0
    %1891 = vmatpush1.msra.mxu0 0.0
    %1892 = vmatprep.subr.mxu0 0.0
    %1893 = vmatpush1.msra.mxu0 0.0
    %1894 = vmatprep.subr.mxu0 0.0
    %1895 = vmatpush1.msra.mxu0 0.0
    %1896 = vmatprep.subr.mxu0 0.0
    %1897 = vmatpush1.msra.mxu0 0.0
    %1898 = vmatprep.subr.mxu0 0.0
    %1899 = vmatpush1.msra.mxu0 0.0
    %1900 = vmatprep.subr.mxu0 0.0
    %1901 = vmatpush1.msra.mxu0 0.0
    %1902 = vmatprep.subr.mxu0 0.0
    %1903 = vmatpush1.msra.mxu0 0.0
    %1904 = vmatprep.subr.mxu0 0.0
    %1905 = vmatpush1.msra.mxu0 0.0
    %1906 = vmatprep.subr.mxu0 0.0
    %1907 = vmatpush1.msra.mxu0 0.0
    %1908 = vmatprep.subr.mxu0 0.0
    %1909 = vmatpush1.msra.mxu0 0.0
    %1910 = vmatprep.subr.mxu0 0.0
    %1911 = vmatpush1.msra.mxu0 0.0
    %1912 = vmatprep.subr.mxu0 0.0
    %1913 = vmatpush1.msra.mxu0 0.0
    %1914 = vmatprep.subr.mxu0 0.0
    %1915 = vmatpush1.msra.mxu0 0.0
    %1916 = vmatprep.subr.mxu0 0.0
    %1917 = vmatpush1.msra.mxu0 0.0
    %1918 = vmatprep.subr.mxu0 0.0
    %1919 = vmatpush1.msra.mxu0 0.0
    %1920 = vmatprep.subr.mxu0 0.0
    %1921 = vmatpush1.msra.mxu0 0.0
    %1922 = vmatprep.mubr.f32.mxu0 0.0
    %1923 = vmatmul.mubr.f32.gmra.mrb[0].mxu0 %v1856
    %v1924 = vpop.f32.mrb[0].mxu0
    %v1925 = vadd.f32 %v1851, %v1924
    %v1926 = vpop.f32.mrb[0].mxu0
    %1927 = vdwg.mxu0
    %v1928 = vmax.f32 %v1925, 0.0
    %v1930 = vlaneseq
    %v1931 = vshrl.u32 %v1930, 7
    %v1932 = vsub.s32 0, %v1931
    %v1933 = vrot.slane %v138, %v1932
    %v1936 = vsel %vm230, %v1928, 0
    %1938 = vmatprep.subr.mxu0 0.0
    %1939 = vmatpush1.msra.mxu0 %v134
    %1940 = vmatprep.subr.mxu0 0.0
    %1941 = vmatpush1.msra.mxu0 %v135
    %1942 = vmatprep.subr.mxu0 0.0
    %1943 = vmatpush1.msra.mxu0 %v136
    %1944 = vmatprep.subr.mxu0 0.0
    %1945 = vmatpush1.msra.mxu0 %v137
    %1946 = vmatprep.subr.mxu0 0.0
    %1947 = vmatpush1.msra.mxu0 0.0
    %1948 = vmatprep.subr.mxu0 0.0
    %1949 = vmatpush1.msra.mxu0 0.0
    %1950 = vmatprep.subr.mxu0 0.0
    %1951 = vmatpush1.msra.mxu0 0.0
    %1952 = vmatprep.subr.mxu0 0.0
    %1953 = vmatpush1.msra.mxu0 0.0
    %1954 = vmatprep.subr.mxu0 0.0
    %1955 = vmatpush1.msra.mxu0 0.0
    %1956 = vmatprep.subr.mxu0 0.0
    %1957 = vmatpush1.msra.mxu0 0.0
    %1958 = vmatprep.subr.mxu0 0.0
    %1959 = vmatpush1.msra.mxu0 0.0
    %1960 = vmatprep.subr.mxu0 0.0
    %1961 = vmatpush1.msra.mxu0 0.0
    %1962 = vmatprep.subr.mxu0 0.0
    %1963 = vmatpush1.msra.mxu0 0.0
    %1964 = vmatprep.subr.mxu0 0.0
    %1965 = vmatpush1.msra.mxu0 0.0
    %1966 = vmatprep.subr.mxu0 0.0
    %1967 = vmatpush1.msra.mxu0 0.0
    %1968 = vmatprep.subr.mxu0 0.0
    %1969 = vmatpush1.msra.mxu0 0.0
    %1970 = vmatprep.subr.mxu0 0.0
    %1971 = vmatpush1.msra.mxu0 0.0
    %1972 = vmatprep.subr.mxu0 0.0
    %1973 = vmatpush1.msra.mxu0 0.0
    %1974 = vmatprep.subr.mxu0 0.0
    %1975 = vmatpush1.msra.mxu0 0.0
    %1976 = vmatprep.subr.mxu0 0.0
    %1977 = vmatpush1.msra.mxu0 0.0
    %1978 = vmatprep.subr.mxu0 0.0
    %1979 = vmatpush1.msra.mxu0 0.0
    %1980 = vmatprep.subr.mxu0 0.0
    %1981 = vmatpush1.msra.mxu0 0.0
    %1982 = vmatprep.subr.mxu0 0.0
    %1983 = vmatpush1.msra.mxu0 0.0
    %1984 = vmatprep.subr.mxu0 0.0
    %1985 = vmatpush1.msra.mxu0 0.0
    %1986 = vmatprep.subr.mxu0 0.0
    %1987 = vmatpush1.msra.mxu0 0.0
    %1988 = vmatprep.subr.mxu0 0.0
    %1989 = vmatpush1.msra.mxu0 0.0
    %1990 = vmatprep.subr.mxu0 0.0
    %1991 = vmatpush1.msra.mxu0 0.0
    %1992 = vmatprep.subr.mxu0 0.0
    %1993 = vmatpush1.msra.mxu0 0.0
    %1994 = vmatprep.subr.mxu0 0.0
    %1995 = vmatpush1.msra.mxu0 0.0
    %1996 = vmatprep.subr.mxu0 0.0
    %1997 = vmatpush1.msra.mxu0 0.0
    %1998 = vmatprep.subr.mxu0 0.0
    %1999 = vmatpush1.msra.mxu0 0.0
    %2000 = vmatprep.subr.mxu0 0.0
    %2001 = vmatpush1.msra.mxu0 0.0
    %2002 = vmatprep.mubr.f32.mxu0 0.0
    %2003 = vmatmul.mubr.f32.gmra.mrb[0].mxu0 %v1936
    %v2004 = vpop.f32.mrb[0].mxu0
    %v2005 = vadd.f32 %v1933, %v2004
    %v2006 = vpop.f32.mrb[0].mxu0
    %2007 = vdwg.mxu0
    %v2008 = vxor.u32 %v2005, 2147483648
    %v2009 = vmul.f32 %v2008, 1.442695
    %v2010 = vpow.pop %v2009
    %v2011 = vadd.f32 %v2010, 1.0
    %v2012 = vrcp.pop %v2011
    %v2013 = vmul.f32 1.0, %v2012
    %vm2014 = vcmask 25600
    %2015 = vst.msk [vmem:[#allocation13] sm:$0x3] %vm2014, %v2013
    // Predicated region
    $region70: #{tpu_custom_call.1} parent=1 // pred_check
      _
    $region71: #{tpu_custom_call.1} parent=1 // pred_check_branch
      %2017 = sbr.rel (0) target = $region73
    $region72: #{tpu_custom_call.1} parent=1 // pred_region
      %s2019 = ssub.s32 32, 32
      %2020 = vsyncadd [#allocation4], %s2019
      %s2022 = sshll.u32 [#allocation13], 4
      %s2023 = int_to_ptr.vmem [resolvable:$true] %s2022
      %2025 = dma.vmem_to_hbm [thread:$0]  %s2023, 32, %s11, [#allocation4]
    $region73: #{tpu_custom_call.1} parent=1 // pred_fallthru
      _
    // Predicated region
    $region74: #{tpu_custom_call.1} parent=1 // pred_check
      _
    $region75: #{tpu_custom_call.1} parent=1 // pred_check_branch
      %2027 = sbr.rel (0) target = $region77
    $region76: #{tpu_custom_call.1} parent=1 // pred_region
      %2028 = dma.done [#allocation4], 32
    $region77: #{tpu_custom_call.1} parent=1 // pred_fallthru
      _
    %2029 = vsyncpa [#allocation3], 1
    %2030 = vsyncpa [#allocation6], 1
    %2031 = vsyncpa [#allocation9], 1
    %2032 = vsyncpa [#allocation12], 1
    %2033 = vsyncpa [#allocation4], 1

</llo_original>
